<compile_context>
chip_gen: v7x
topology: tpu7x:2x2x1
jax: 0.10.0
libtpu: 0.0.40
codegen_flags: <defaults>
</compile_context>

<pallas_src>
import functools

import jax
import jax.numpy as jnp
import numpy as np
from jax.experimental import pallas as pl
from jax.experimental.pallas import tpu as pltpu


def _round_up(a, b):
    return ((a + b - 1) // b) * b


def _spatial_transform_kernel(kband_ref, w_ref, x_ref, o_ref, *, Wi, HWi):
    # kband_ref: SMEM (n_p, 2) int32 -- per output tile [kmin, kmax] chunk band
    # w_ref    : (8, tp)  rows: wx0, wx1, wy0, wy1, wz0, wz1, flat0(bits), pad
    # x_ref    : (Cp, ts) source-voxel chunk (bf16, zero padded)
    # o_ref    : (Cp, tp) resident across the reduction axis -> accumulator
    i = pl.program_id(0)          # output-point tile  ("parallel")
    k = pl.program_id(1)          # source-voxel chunk ("arbitrary" reduction)
    ts = x_ref.shape[1]
    tp = w_ref.shape[1]

    @pl.when(k == 0)
    def _init():
        o_ref[...] = jnp.zeros_like(o_ref)

    kmin = kband_ref[i, 0]
    kmax = kband_ref[i, 1]

    # Skip chunks this output tile can never read (all weights would be 0).
    @pl.when((k >= kmin) & (k <= kmax))
    def _compute():
        w = w_ref[...]                                           # (8, tp) f32
        w_bits = pltpu.bitcast(w, jnp.int32)                     # same block, i32 view
        wx0, wx1 = w[0:1, :], w[1:2, :]
        wy = (w[2:3, :], w[3:4, :])
        wz = (w[4:5, :], w[5:6, :])
        # flat index of the (dz=dy=dx=0) corner, local to this source chunk.
        flat0 = w_bits[6:7, :] - k * ts                          # (1, tp) int32
        iota_s = jax.lax.broadcasted_iota(jnp.int32, (ts, 1), 0)  # (ts, 1)

        # OOB corners may alias valid rows, but their weights are already zero.
        m = jnp.zeros((ts, tp), jnp.float32)
        for dz in (0, 1):
            for dy in (0, 1):
                tgt = flat0 + (dz * HWi + dy * Wi)               # (1, tp)
                wzy = wz[dz] * wy[dy]                            # (1, tp)
                # fused dx pair: 5 (ts,tp) plane ops per 2 corners
                m = m + jnp.where(iota_s == tgt, wzy * wx0,
                                  jnp.where(iota_s == tgt + 1, wzy * wx1, 0.0))

        o_ref[...] += jnp.dot(x_ref[...], m.astype(x_ref.dtype),
                              preferred_element_type=jnp.float32)


def spatial_transform(x, flow, sample_grid, *, tp=1024, ts=1024,
                      value_dtype=jnp.bfloat16):
    """Pallas equivalent of SpatialTransform.forward(x, flow, sample_grid)."""
    N, C, Di, Hi, Wi = x.shape
    Ng, Dg, Hg, Wg, three = sample_grid.shape
    assert N == 1 and Ng == 1 and three == 3, "module semantics assume batch 1"
    assert Dg > 1 and Hg > 1 and Wg > 1, "normalization divides by (dim - 1)"
    assert flow.shape == sample_grid.shape

    S = Di * Hi * Wi
    P = Dg * Hg * Wg
    HWi = Hi * Wi

    sub = 16 if value_dtype == jnp.bfloat16 else 8
    Cp = max(sub, _round_up(C, sub))      # sublane quantum only (no MXU padding)

    tp = _round_up(max(128, min(tp, _round_up(P, 128))), 128)
    # v7x megacore: give the "parallel" P axis >= 2 tiles whenever possible.
    if _round_up(P, tp) // tp < 2 and _round_up(P, 128) >= 256:
        tp = _round_up(_round_up(P, 128) // 2, 128)
    ts = _round_up(max(128, min(ts, _round_up(S, 128))), 128)
    Pp = _round_up(P, tp)                 # lane-dense output tiles (no vst.msk)
    Sp = _round_up(S, ts)
    n_p = Pp // tp
    n_s = Sp // ts

    # ---- per-point precompute (runs once in XLA, not per reduction step) ----
    g = (sample_grid + flow)[0].reshape(P, 3).astype(jnp.float32)
    # normalize with the grid's own dims (module semantics), then unnormalize
    # to x voxel coordinates (grid_sample align_corners=True).
    ix = ((g[:, 0] - (Wg - 1) * 0.5) * (2.0 / (Wg - 1)) + 1.0) * (0.5 * (Wi - 1))
    iy = ((g[:, 1] - (Hg - 1) * 0.5) * (2.0 / (Hg - 1)) + 1.0) * (0.5 * (Hi - 1))
    iz = ((g[:, 2] - (Dg - 1) * 0.5) * (2.0 / (Dg - 1)) + 1.0) * (0.5 * (Di - 1))

    def corner(v, n):
        v0 = jnp.floor(v)
        f = v - v0
        # clamp the integer corner so flat0 cannot overflow int32 for extreme
        # flows; the clamp range keeps the padding masks identical (all-zero).
        vi = jnp.clip(v0, -2.0, float(n + 1)).astype(jnp.int32)
        w0 = jnp.where((vi >= 0) & (vi <= n - 1), 1.0 - f, 0.0)
        w1 = jnp.where((vi >= -1) & (vi <= n - 2), f, 0.0)
        return vi, w0, w1

    ixi, wx0, wx1 = corner(ix, Wi)
    iyi, wy0, wy1 = corner(iy, Hi)
    izi, wz0, wz1 = corner(iz, Di)
    flat0 = izi * HWi + iyi * Wi + ixi                          # (P,) int32

    # Packed per-point stream: 6 masked corner weights + flat0 bit-cast to f32.
    w_rows = jnp.stack(
        [wx0, wx1, wy0, wy1, wz0, wz1,
         jax.lax.bitcast_convert_type(flat0, jnp.float32),
         jnp.zeros((P,), jnp.float32)], axis=0)                 # (8, P)
    w_pack = jnp.zeros((8, Pp), jnp.float32).at[:, :P].set(w_rows)

    # Per-output-tile band of source chunks that can receive nonzero weight.
    maxoff = HWi + Wi + 1
    lo = jnp.clip(flat0, 0, S - 1)
    hi = jnp.clip(flat0 + maxoff, 0, S - 1)
    lo_p = jnp.full((Pp,), S - 1, jnp.int32).at[:P].set(lo)     # padding: neutral
    hi_p = jnp.zeros((Pp,), jnp.int32).at[:P].set(hi)
    kmin = jnp.min(lo_p.reshape(n_p, tp), axis=1) // ts
    kmax = jnp.max(hi_p.reshape(n_p, tp), axis=1) // ts
    kband = jnp.stack([kmin, kmax], axis=1).astype(jnp.int32)   # (n_p, 2)

    # Flattened source volume (channel- and source-padded, bf16 values).
    x_flat = jnp.zeros((Cp, Sp), value_dtype).at[:C, :S].set(
        x[0].reshape(C, S).astype(value_dtype))

    kernel = functools.partial(_spatial_transform_kernel, Wi=Wi, HWi=HWi)

    grid_spec = pltpu.PrefetchScalarGridSpec(
        num_scalar_prefetch=1,
        grid=(n_p, n_s),
        in_specs=[
            pl.BlockSpec((8, tp), lambda i, k, kb: (0, i)),
            # clamp the source chunk to the tile's band: out-of-band steps keep
            # the same block index, so the pipeline issues no DMA for them.
            pl.BlockSpec((Cp, ts),
                         lambda i, k, kb: (0, jnp.maximum(
                             kb[i, 0], jnp.minimum(k, kb[i, 1])))),
        ],
        out_specs=pl.BlockSpec((Cp, tp), lambda i, k, kb: (0, i)),
    )

    bytes_accessed = (int(x_flat.size) * int(jnp.dtype(value_dtype).itemsize)
                      + int(w_pack.size) * 4 + Cp * Pp * 4)
    out = pl.pallas_call(
        kernel,
        out_shape=jax.ShapeDtypeStruct((Cp, Pp), jnp.float32),
        grid_spec=grid_spec,
        compiler_params=pltpu.CompilerParams(
            dimension_semantics=("parallel", "arbitrary"),
            # v7x ceiling is 64 MiB; defaults (ts=tp=1024 -> ~3 live 4 MiB
            # planes + double-buffered I/O) fit comfortably.  On v5e/v6e this
            # could be raised toward 96 MiB with bigger tiles.
            vmem_limit_bytes=48 << 20),
        cost_estimate=pl.CostEstimate(
            flops=2 * Cp * Pp * Sp + 20 * Pp * Sp,
            transcendentals=0,
            bytes_accessed=bytes_accessed),
    )(kband, w_pack, x_flat)

    return out[:C, :P].reshape(1, C, Dg, Hg, Wg)


def reference(x, flow, sample_grid):
    """Pure-JAX reimplementation of the PyTorch forward (for validation)."""
    g = sample_grid + flow
    N, C, Di, Hi, Wi = x.shape
    _, Dg, Hg, Wg, _ = g.shape
    gx = (g[..., 0] - (Wg - 1) / 2) / (Wg - 1) * 2
    gy = (g[..., 1] - (Hg - 1) / 2) / (Hg - 1) * 2
    gz = (g[..., 2] - (Dg - 1) / 2) / (Dg - 1) * 2
    ix = (gx + 1) * 0.5 * (Wi - 1)
    iy = (gy + 1) * 0.5 * (Hi - 1)
    iz = (gz + 1) * 0.5 * (Di - 1)
    ix0 = jnp.floor(ix); iy0 = jnp.floor(iy); iz0 = jnp.floor(iz)
    out = jnp.zeros((N, C, Dg, Hg, Wg), jnp.float32)
    for dx in (0, 1):
        for dy in (0, 1):
            for dz in (0, 1):
                xi = ix0 + dx; yi = iy0 + dy; zi = iz0 + dz
                w = ((1 - jnp.abs(ix - xi)) * (1 - jnp.abs(iy - yi)) *
                     (1 - jnp.abs(iz - zi)))
                inb = ((xi >= 0) & (xi < Wi) & (yi >= 0) & (yi < Hi) &
                       (zi >= 0) & (zi < Di))
                w = jnp.where(inb, w, 0.0)
                xic = jnp.clip(xi, 0, Wi - 1).astype(jnp.int32)
                yic = jnp.clip(yi, 0, Hi - 1).astype(jnp.int32)
                zic = jnp.clip(zi, 0, Di - 1).astype(jnp.int32)
                vals = x[0][:, zic[0], yic[0], xic[0]]
                out = out.at[0].add(w[0][None] * vals)
    return out


def _identity_grid(D, H, W):
    zz, yy, xx = jnp.meshgrid(jnp.arange(D, dtype=jnp.float32),
                              jnp.arange(H, dtype=jnp.float32),
                              jnp.arange(W, dtype=jnp.float32), indexing="ij")
    return jnp.stack([xx, yy, zz], axis=-1)[None]    # (1, D, H, W, 3), (x, y, z)


if __name__ == "__main__":
    key = jax.random.PRNGKey(0)
    k1, k2, k3, k4 = jax.random.split(key, 4)

    # --- case 1: cubic volume; small tiles exercise multi-tile P axis, the
    # reduction axis, the band skip and the clamped x index_map --------------
    N, C, D, H, W = 1, 4, 8, 8, 8
    x = jax.random.normal(k1, (N, C, D, H, W), jnp.float32)
    grid1 = _identity_grid(D, H, W)
    flow1 = 0.75 * jax.random.normal(k2, (N, D, H, W, 3), jnp.float32)

    # sanity 1: zero flow + identity grid ==> output equals x (bf16 values)
    out_id = spatial_transform(x, jnp.zeros_like(flow1), grid1, tp=256, ts=128)
    jax.block_until_ready(out_id)
    np.testing.assert_allclose(np.asarray(out_id), np.asarray(x),
                               atol=3e-2, rtol=0)

    # sanity 2: random flow vs. pure-JAX reference of the PyTorch forward
    out1 = spatial_transform(x, flow1, grid1, tp=256, ts=128)
    jax.block_until_ready(out1)
    ref1 = reference(x, flow1, grid1)
    np.testing.assert_allclose(np.asarray(out1), np.asarray(ref1),
                               atol=5e-2, rtol=1e-2)

    # --- case 2: non-aligned, non-cubic shapes with default tiles (exercises
    # S/P padding and the automatic tp shrink for a 2-tile parallel axis) ----
    C2, Di2, Hi2, Wi2 = 3, 6, 7, 9
    Dg2, Hg2, Wg2 = 5, 6, 7
    x2 = jax.random.normal(k3, (1, C2, Di2, Hi2, Wi2), jnp.float32)
    grid2 = _identity_grid(Dg2, Hg2, Wg2)
    flow2 = 0.5 * jax.random.normal(k4, (1, Dg2, Hg2, Wg2, 3), jnp.float32)

    out2 = spatial_transform(x2, flow2, grid2)
    jax.block_until_ready(out2)
    ref2 = reference(x2, flow2, grid2)
    np.testing.assert_allclose(np.asarray(out2), np.asarray(ref2),
                               atol=5e-2, rtol=1e-2)

    print("KERNEL_OK")
</pallas_src>

<mosaic_0001>
module attributes {stable_mosaic.version = 11 : i64} {
  func.func @_spatial_transform_kernel(%arg0: i32, %arg1: i32, %arg2: memref<2x2xi32, #tpu.memory_space<smem>>, %arg3: memref<8x256xf32, #tpu.memory_space<vmem>>, %arg4: memref<16x128xbf16, #tpu.memory_space<vmem>>, %arg5: memref<16x256xf32, #tpu.memory_space<vmem>>) attributes {dimension_semantics = [#tpu.dimension_semantics<parallel>, #tpu.dimension_semantics<arbitrary>], iteration_bounds = array<i64: 2, 4>, scalar_prefetch = 1 : i64, scratch_operands = 0 : i64, tpu.core_type = #tpu.core_type<tc>, window_params = [{transform_indices = @transform_0, window_bounds = array<i64: 8, 256>}, {transform_indices = @transform_1, window_bounds = array<i64: 16, 128>}, {transform_indices = @transform_2, window_bounds = array<i64: 16, 256>}]} {
    %c0_i32 = arith.constant 0 : i32
    %0 = arith.cmpi eq, %arg1, %c0_i32 : i32
    %1 = arith.extui %0 : i1 to i32
    %c0_i32_0 = arith.constant 0 : i32
    %2 = arith.cmpi ne, %1, %c0_i32_0 : i32
    scf.if %2 {
      %cst = arith.constant 0.000000e+00 : f32
      %12 = vector.broadcast %cst : f32 to vector<16x256xf32>
      %c0_2 = arith.constant 0 : index
      %c0_3 = arith.constant 0 : index
      %13 = vector.load %arg5[%c0_2, %c0_3] : memref<16x256xf32, #tpu.memory_space<vmem>>, vector<16x256xf32>
      tpu.vector_store %arg5[%c0_2, %c0_3], %12 {strides = array<i32>} : memref<16x256xf32, #tpu.memory_space<vmem>>, vector<16x256xf32>,
    } else {
    }
    %3 = arith.index_cast %arg0 : i32 to index
    %c0 = arith.constant 0 : index
    %4 = memref.load %arg2[%3, %c0] : memref<2x2xi32, #tpu.memory_space<smem>>
    %5 = arith.index_cast %arg0 : i32 to index
    %c1 = arith.constant 1 : index
    %6 = memref.load %arg2[%5, %c1] : memref<2x2xi32, #tpu.memory_space<smem>>
    %7 = arith.cmpi sge, %arg1, %4 : i32
    %8 = arith.cmpi sle, %arg1, %6 : i32
    %9 = arith.andi %7, %8 : i1
    %10 = arith.extui %9 : i1 to i32
    %c0_i32_1 = arith.constant 0 : i32
    %11 = arith.cmpi ne, %10, %c0_i32_1 : i32
    scf.if %11 {
      %c0_2 = arith.constant 0 : index
      %c0_3 = arith.constant 0 : index
      %12 = vector.load %arg3[%c0_2, %c0_3] : memref<8x256xf32, #tpu.memory_space<vmem>>, vector<8x256xf32>
      %13 = tpu.bitcast %12 : vector<8x256xf32> -> vector<8x256xi32>
      %14 = vector.extract_strided_slice %12 {offsets = [0, 0], sizes = [1, 256], strides = [1, 1]} : vector<8x256xf32> to vector<1x256xf32>
      %15 = vector.extract_strided_slice %12 {offsets = [1, 0], sizes = [1, 256], strides = [1, 1]} : vector<8x256xf32> to vector<1x256xf32>
      %16 = vector.extract_strided_slice %12 {offsets = [2, 0], sizes = [1, 256], strides = [1, 1]} : vector<8x256xf32> to vector<1x256xf32>
      %17 = vector.extract_strided_slice %12 {offsets = [3, 0], sizes = [1, 256], strides = [1, 1]} : vector<8x256xf32> to vector<1x256xf32>
      %18 = vector.extract_strided_slice %12 {offsets = [4, 0], sizes = [1, 256], strides = [1, 1]} : vector<8x256xf32> to vector<1x256xf32>
      %19 = vector.extract_strided_slice %12 {offsets = [5, 0], sizes = [1, 256], strides = [1, 1]} : vector<8x256xf32> to vector<1x256xf32>
      %20 = vector.extract_strided_slice %13 {offsets = [6, 0], sizes = [1, 256], strides = [1, 1]} : vector<8x256xi32> to vector<1x256xi32>
      %c128_i32 = arith.constant 128 : i32
      %21 = arith.muli %arg1, %c128_i32 : i32
      %22 = vector.broadcast %21 : i32 to vector<1x256xi32>
      %23 = arith.subi %20, %22 : vector<1x256xi32>
      %24 = tpu.iota {dimensions = array<i32: 0>} : vector<128x1xi32>
      %cst = arith.constant 0.000000e+00 : f32
      %25 = vector.broadcast %cst : f32 to vector<128x256xf32>
      %c0_i32_4 = arith.constant 0 : i32
      %26 = vector.broadcast %c0_i32_4 : i32 to vector<1x256xi32>
      %27 = arith.addi %23, %26 : vector<1x256xi32>
      %28 = arith.mulf %18, %16 : vector<1x256xf32>
      %29 = vector.broadcast %24 : vector<128x1xi32> to vector<128x256xi32>
      %30 = vector.broadcast %27 : vector<1x256xi32> to vector<128x256xi32>
      %31 = arith.cmpi eq, %29, %30 : vector<128x256xi32>
      %32 = arith.mulf %28, %14 : vector<1x256xf32>
      %c1_i32 = arith.constant 1 : i32
      %33 = vector.broadcast %c1_i32 : i32 to vector<1x256xi32>
      %34 = arith.addi %27, %33 : vector<1x256xi32>
      %35 = vector.broadcast %24 : vector<128x1xi32> to vector<128x256xi32>
      %36 = vector.broadcast %34 : vector<1x256xi32> to vector<128x256xi32>
      %37 = arith.cmpi eq, %35, %36 : vector<128x256xi32>
      %38 = arith.mulf %28, %15 : vector<1x256xf32>
      %cst_5 = arith.constant 0.000000e+00 : f32
      %39 = vector.shape_cast %38 : vector<1x256xf32> to vector<1x256xf32>
      %40 = vector.broadcast %39 : vector<1x256xf32> to vector<128x256xf32>
      %41 = vector.broadcast %cst_5 : f32 to vector<128x256xf32>
      %42 = arith.select %37, %40, %41 : vector<128x256xi1>, vector<128x256xf32>
      %43 = vector.shape_cast %32 : vector<1x256xf32> to vector<1x256xf32>
      %44 = vector.broadcast %43 : vector<1x256xf32> to vector<128x256xf32>
      %45 = arith.select %31, %44, %42 : vector<128x256xi1>, vector<128x256xf32>
      %46 = arith.addf %25, %45 : vector<128x256xf32>
      %c8_i32 = arith.constant 8 : i32
      %47 = vector.broadcast %c8_i32 : i32 to vector<1x256xi32>
      %48 = arith.addi %23, %47 : vector<1x256xi32>
      %49 = arith.mulf %18, %17 : vector<1x256xf32>
      %50 = vector.broadcast %24 : vector<128x1xi32> to vector<128x256xi32>
      %51 = vector.broadcast %48 : vector<1x256xi32> to vector<128x256xi32>
      %52 = arith.cmpi eq, %50, %51 : vector<128x256xi32>
      %53 = arith.mulf %49, %14 : vector<1x256xf32>
      %c1_i32_6 = arith.constant 1 : i32
      %54 = vector.broadcast %c1_i32_6 : i32 to vector<1x256xi32>
      %55 = arith.addi %48, %54 : vector<1x256xi32>
      %56 = vector.broadcast %24 : vector<128x1xi32> to vector<128x256xi32>
      %57 = vector.broadcast %55 : vector<1x256xi32> to vector<128x256xi32>
      %58 = arith.cmpi eq, %56, %57 : vector<128x256xi32>
      %59 = arith.mulf %49, %15 : vector<1x256xf32>
      %cst_7 = arith.constant 0.000000e+00 : f32
      %60 = vector.shape_cast %59 : vector<1x256xf32> to vector<1x256xf32>
      %61 = vector.broadcast %60 : vector<1x256xf32> to vector<128x256xf32>
      %62 = vector.broadcast %cst_7 : f32 to vector<128x256xf32>
      %63 = arith.select %58, %61, %62 : vector<128x256xi1>, vector<128x256xf32>
      %64 = vector.shape_cast %53 : vector<1x256xf32> to vector<1x256xf32>
      %65 = vector.broadcast %64 : vector<1x256xf32> to vector<128x256xf32>
      %66 = arith.select %52, %65, %63 : vector<128x256xi1>, vector<128x256xf32>
      %67 = arith.addf %46, %66 : vector<128x256xf32>
      %c64_i32 = arith.constant 64 : i32
      %68 = vector.broadcast %c64_i32 : i32 to vector<1x256xi32>
      %69 = arith.addi %23, %68 : vector<1x256xi32>
      %70 = arith.mulf %19, %16 : vector<1x256xf32>
      %71 = vector.broadcast %24 : vector<128x1xi32> to vector<128x256xi32>
      %72 = vector.broadcast %69 : vector<1x256xi32> to vector<128x256xi32>
      %73 = arith.cmpi eq, %71, %72 : vector<128x256xi32>
      %74 = arith.mulf %70, %14 : vector<1x256xf32>
      %c1_i32_8 = arith.constant 1 : i32
      %75 = vector.broadcast %c1_i32_8 : i32 to vector<1x256xi32>
      %76 = arith.addi %69, %75 : vector<1x256xi32>
      %77 = vector.broadcast %24 : vector<128x1xi32> to vector<128x256xi32>
      %78 = vector.broadcast %76 : vector<1x256xi32> to vector<128x256xi32>
      %79 = arith.cmpi eq, %77, %78 : vector<128x256xi32>
      %80 = arith.mulf %70, %15 : vector<1x256xf32>
      %cst_9 = arith.constant 0.000000e+00 : f32
      %81 = vector.shape_cast %80 : vector<1x256xf32> to vector<1x256xf32>
      %82 = vector.broadcast %81 : vector<1x256xf32> to vector<128x256xf32>
      %83 = vector.broadcast %cst_9 : f32 to vector<128x256xf32>
      %84 = arith.select %79, %82, %83 : vector<128x256xi1>, vector<128x256xf32>
      %85 = vector.shape_cast %74 : vector<1x256xf32> to vector<1x256xf32>
      %86 = vector.broadcast %85 : vector<1x256xf32> to vector<128x256xf32>
      %87 = arith.select %73, %86, %84 : vector<128x256xi1>, vector<128x256xf32>
      %88 = arith.addf %67, %87 : vector<128x256xf32>
      %c72_i32 = arith.constant 72 : i32
      %89 = vector.broadcast %c72_i32 : i32 to vector<1x256xi32>
      %90 = arith.addi %23, %89 : vector<1x256xi32>
      %91 = arith.mulf %19, %17 : vector<1x256xf32>
      %92 = vector.broadcast %24 : vector<128x1xi32> to vector<128x256xi32>
      %93 = vector.broadcast %90 : vector<1x256xi32> to vector<128x256xi32>
      %94 = arith.cmpi eq, %92, %93 : vector<128x256xi32>
      %95 = arith.mulf %91, %14 : vector<1x256xf32>
      %c1_i32_10 = arith.constant 1 : i32
      %96 = vector.broadcast %c1_i32_10 : i32 to vector<1x256xi32>
      %97 = arith.addi %90, %96 : vector<1x256xi32>
      %98 = vector.broadcast %24 : vector<128x1xi32> to vector<128x256xi32>
      %99 = vector.broadcast %97 : vector<1x256xi32> to vector<128x256xi32>
      %100 = arith.cmpi eq, %98, %99 : vector<128x256xi32>
      %101 = arith.mulf %91, %15 : vector<1x256xf32>
      %cst_11 = arith.constant 0.000000e+00 : f32
      %102 = vector.shape_cast %101 : vector<1x256xf32> to vector<1x256xf32>
      %103 = vector.broadcast %102 : vector<1x256xf32> to vector<128x256xf32>
      %104 = vector.broadcast %cst_11 : f32 to vector<128x256xf32>
      %105 = arith.select %100, %103, %104 : vector<128x256xi1>, vector<128x256xf32>
      %106 = vector.shape_cast %95 : vector<1x256xf32> to vector<1x256xf32>
      %107 = vector.broadcast %106 : vector<1x256xf32> to vector<128x256xf32>
      %108 = arith.select %94, %107, %105 : vector<128x256xi1>, vector<128x256xf32>
      %109 = arith.addf %88, %108 : vector<128x256xf32>
      %c0_12 = arith.constant 0 : index
      %c0_13 = arith.constant 0 : index
      %110 = vector.load %arg5[%c0_12, %c0_13] : memref<16x256xf32, #tpu.memory_space<vmem>>, vector<16x256xf32>
      %c0_14 = arith.constant 0 : index
      %c0_15 = arith.constant 0 : index
      %111 = vector.load %arg4[%c0_14, %c0_15] : memref<16x128xbf16, #tpu.memory_space<vmem>>, vector<16x128xbf16>
      %112 = arith.truncf %109 : vector<128x256xf32> to vector<128x256xbf16>
      %cst_16 = arith.constant dense<0.000000e+00> : vector<16x256xf32>
      %113 = tpu.matmul %111, %112, %cst_16 {dimension_numbers = #tpu.dot_dimension_numbers<[1], [0], [0], [1], [0, 0, 1, 1], [], []>} : vector<16x128xbf16>, vector<128x256xbf16>, vector<16x256xf32> -> vector<16x256xf32>
      %114 = arith.addf %110, %113 : vector<16x256xf32>
      %c0_17 = arith.constant 0 : index
      %c0_18 = arith.constant 0 : index
      %115 = vector.load %arg5[%c0_17, %c0_18] : memref<16x256xf32, #tpu.memory_space<vmem>>, vector<16x256xf32>
      tpu.vector_store %arg5[%c0_17, %c0_18], %114 {strides = array<i32>} : memref<16x256xf32, #tpu.memory_space<vmem>>, vector<16x256xf32>,
    } else {
    }
    return
  }
  func.func @transform_0(%arg0: i32, %arg1: i32, %arg2: memref<2x2xi32, #tpu.memory_space<smem>>) -> (i32, i32) {
    %c0_i32 = arith.constant 0 : i32
    %c0_i32_0 = arith.constant 0 : i32
    return %c0_i32, %arg0 : i32, i32
  }
  func.func @transform_1(%arg0: i32, %arg1: i32, %arg2: memref<2x2xi32, #tpu.memory_space<smem>>) -> (i32, i32) {
    %0 = arith.index_cast %arg0 : i32 to index
    %c0 = arith.constant 0 : index
    %1 = memref.load %arg2[%0, %c0] : memref<2x2xi32, #tpu.memory_space<smem>>
    %2 = arith.index_cast %arg0 : i32 to index
    %c1 = arith.constant 1 : index
    %3 = memref.load %arg2[%2, %c1] : memref<2x2xi32, #tpu.memory_space<smem>>
    %4 = arith.minsi %arg1, %3 : i32
    %5 = arith.maxsi %1, %4 : i32
    %c0_i32 = arith.constant 0 : i32
    %c0_i32_0 = arith.constant 0 : i32
    return %c0_i32, %5 : i32, i32
  }
  func.func @transform_2(%arg0: i32, %arg1: i32, %arg2: memref<2x2xi32, #tpu.memory_space<smem>>) -> (i32, i32) {
    %c0_i32 = arith.constant 0 : i32
    %c0_i32_0 = arith.constant 0 : i32
    return %c0_i32, %arg0 : i32, i32
  }
}

</mosaic_0001>

<llo_original>
// kernel: tpu_custom_call.1
$region0: #{tpu_custom_call.1}
  #allocation0 [shape = 'u32[]', space=smem, size = 0x4, offset = 0x4, fixed_abs, tag = 'smem constant byte address 0x4 - core index']
  #allocation1 [shape = 'u32[144,128]{1,0:T(1,128)}', space=vmem, size = 0x12000, scoped, tag = 'internal scratch']
  #allocation2 [shape = 's32[1]{0}', space=sflag, size = 0x4, scoped, tag = 'scoped memory for tpu_custom_call.1']
  #allocation3 [shape = 'u8[1024]{0}', space=smem, size = 0x400, scoped, tag = 'prefetched SMEM operand 0']
  %s0 = inlined_call_operand.hbm [shape: s32[2,2], index: 0, kind: input, shape index: {}]
  %s1 = inlined_call_operand.hbm [shape: f32[8,512], index: 1, kind: input, shape index: {}]
  %s2 = inlined_call_operand.hbm [shape: bf16[16,512], index: 2, kind: input, shape index: {}]
  %s3 = inlined_call_operand.hbm [shape: f32[16,512], index: 3, kind: output, shape index: {}]
  %s4 = sld [smem:[#allocation0]]
  $region57: #{tpu_custom_call.1} parent=0
    _
  %s6 = ssub.s32 1, %s4
  %s7 = scalar_select 0, %s6, %s4
  %9 = dma.hbm_to_smem %s0, 32, [#allocation3], [#allocation2]
  %10 = dma.done [#allocation2], 32
  %11 = sfence
  $region1: #{tpu_custom_call.1} parent=0
    #allocation4 [shape = 'u8[16384]{0}', space=vmem, size = 0x4000, scoped, tag = 'input window, operand 1']
    #allocation5 [shape = 's32[2]{0}', space=sflag, size = 0x8, scoped, tag = 'scoped memory for tpu_custom_call.1']
    #allocation6 [shape = 's32[2]{0}', space=sflag, size = 0x8, scoped, tag = 'scoped memory for tpu_custom_call.1']
    #allocation7 [shape = 'u8[8192]{0}', space=vmem, size = 0x2000, scoped, tag = 'input window, operand 2']
    #allocation8 [shape = 's32[2]{0}', space=sflag, size = 0x8, scoped, tag = 'scoped memory for tpu_custom_call.1']
    #allocation9 [shape = 'u8[32768]{0}', space=vmem, size = 0x8000, scoped, tag = 'output window, operand 0']
    %12 = vsyncpa [#allocation5], 0
    %s13 = scalar_lea.sflag [#allocation5], 1
    %14 = vsyncpa %s13, 0
    %15 = vsyncpa [#allocation8], 0
    %s16 = scalar_lea.sflag [#allocation8], 1
    %17 = vsyncpa %s16, 0
    %18 = vsyncpa [#allocation6], 0
    %s19 = scalar_lea.sflag [#allocation6], 1
    %20 = vsyncpa %s19, 0
    loop: start=0, step=1, limit=10
    $region2: #{tpu_custom_call.1} parent=1 // loop_pre_header
      _
    $region3: #{tpu_custom_call.1} parent=1 // loop_header
      %s22 = sphi 0, %s26
      %p23 = scmp.ge.s32.totalorder %s22, 10
      %s29 = sphi 0, %s41
      %s30 = sphi 0, %s37
      %s31 = sphi 0, %s29
      %s32 = sphi 0, %s30
      %s33 = sphi 0, %s31
      %s34 = sphi 0, %s32
      %s44 = sphi 0, %s46
      %s47 = sphi 0, %s44
      %s48 = sphi 0, %s47
      %s64 = sphi 0, %s48
      %s86 = sphi 0, %s88
      %s89 = sphi 0, %s86
      %s90 = sphi 0, %s89
      %s106 = sphi 0, %s90
      %s112 = sphi 0, %s114
      %s115 = sphi 0, %s112
      %s116 = sphi 0, %s115
      %s132 = sphi 0, %s116
    $region4: #{tpu_custom_call.1} parent=1 // loop_header_branch
      %25 = sbr.rel (%p23) target = $region8
    $region5: #{tpu_custom_call.1} parent=1 // loop_body
      %s27 = ssub.s32 %s22, 1
      %s28 = ssub.s32 %s22, 2
      %s35 = sadd.s32 1, %s30
      %p36 = scmp.ge.s32.totalorder %s35, 4
      %s37 = scalar_select %p36, 0, %s35
      %s38 = sadd.s32 1, %s29
      %s39 = scalar_select %p36, %s38, %s29
      %p40 = scmp.ge.s32.totalorder %s39, 2
      %s41 = scalar_select %p40, 0, %s39
      %s42 = ssub.s32 %s29, %s41
      %p43 = scmp.eq.s32.totalorder %s42, 0
      %s45 = sadd.s32 %s44, 1
      %s46 = scalar_select %p43, %s44, %s45
      %p49 = pneg %p43
      %p50 = scmp.eq.s32.totalorder %s22, 7
      %p51 = por %p49, %p50
      %p52 = scmp.ne.s32.totalorder %s44, %s47
      %p53 = scmp.eq.s32.totalorder %s22, 0
      %p54 = por %p52, %p53
      %p55 = scmp.ne.s32.totalorder %s44, %s47
      %p56 = scmp.eq.s32.totalorder %s27, 7
      %p57 = por %p55, %p56
      %p58 = scmp.ne.s32.totalorder %s47, %s48
      %p59 = scmp.eq.s32.totalorder %s27, 0
      %p60 = por %p58, %p59
      %p61 = scmp.ne.s32.totalorder %s47, %s48
      %p62 = scmp.eq.s32.totalorder %s28, 7
      %p63 = por %p61, %p62
      %p65 = scmp.ne.s32.totalorder %s48, %s64
      %p66 = scmp.eq.s32.totalorder %s28, 0
      %p67 = por %p65, %p66
      %s68 = smul.u32 %s29, 128
      %s69 = sld [smem:[#allocation3 + %s68]]
      %s70 = sadd.s32 %s68, 1
      %s71 = sld [smem:[#allocation3 + %s70]]
      %p72 = scmp.lt.s32.totalorder %s30, %s71
      %s73 = scalar_select %p72, %s30, %s71
      %p74 = scmp.gt.s32.totalorder %s69, %s73
      %s75 = scalar_select %p74, %s69, %s73
      %s76 = smul.u32 %s41, 128
      %s77 = sld [smem:[#allocation3 + %s76]]
      %s78 = sadd.s32 %s76, 1
      %s79 = sld [smem:[#allocation3 + %s78]]
      %p80 = scmp.lt.s32.totalorder %s37, %s79
      %s81 = scalar_select %p80, %s37, %s79
      %p82 = scmp.gt.s32.totalorder %s77, %s81
      %s83 = scalar_select %p82, %s77, %s81
      %s84 = ssub.s32 %s75, %s83
      %p85 = scmp.eq.s32.totalorder %s84, 0
      %s87 = sadd.s32 %s86, 1
      %s88 = scalar_select %p85, %s86, %s87
      %p91 = pneg %p85
      %p92 = scmp.eq.s32.totalorder %s22, 7
      %p93 = por %p91, %p92
      %p94 = scmp.ne.s32.totalorder %s86, %s89
      %p95 = scmp.eq.s32.totalorder %s22, 0
      %p96 = por %p94, %p95
      %p97 = scmp.ne.s32.totalorder %s86, %s89
      %p98 = scmp.eq.s32.totalorder %s27, 7
      %p99 = por %p97, %p98
      %p100 = scmp.ne.s32.totalorder %s89, %s90
      %p101 = scmp.eq.s32.totalorder %s27, 0
      %p102 = por %p100, %p101
      %p103 = scmp.ne.s32.totalorder %s89, %s90
      %p104 = scmp.eq.s32.totalorder %s28, 7
      %p105 = por %p103, %p104
      %p107 = scmp.ne.s32.totalorder %s90, %s106
      %p108 = scmp.eq.s32.totalorder %s28, 0
      %p109 = por %p107, %p108
      %s110 = ssub.s32 %s29, %s41
      %p111 = scmp.eq.s32.totalorder %s110, 0
      %s113 = sadd.s32 %s112, 1
      %s114 = scalar_select %p111, %s112, %s113
      %p117 = pneg %p111
      %p118 = scmp.eq.s32.totalorder %s22, 7
      %p119 = por %p117, %p118
      %p120 = scmp.ne.s32.totalorder %s112, %s115
      %p121 = scmp.eq.s32.totalorder %s22, 0
      %p122 = por %p120, %p121
      %p123 = scmp.ne.s32.totalorder %s112, %s115
      %p124 = scmp.eq.s32.totalorder %s27, 7
      %p125 = por %p123, %p124
      %p126 = scmp.ne.s32.totalorder %s115, %s116
      %p127 = scmp.eq.s32.totalorder %s27, 0
      %p128 = por %p126, %p127
      %p129 = scmp.ne.s32.totalorder %s115, %s116
      %p130 = scmp.eq.s32.totalorder %s28, 7
      %p131 = por %p129, %p130
      %p133 = scmp.ne.s32.totalorder %s116, %s132
      %p134 = scmp.eq.s32.totalorder %s28, 0
      %p135 = por %p133, %p134
      %p136 = scmp.le.s32.totalorder 1, %s22
      %p137 = scmp.lt.s32.totalorder %s22, 9
      %p138 = pnand %p136, %p137
      %p139 = pneg %p138
      // Predicated region
      $region9: #{tpu_custom_call.1} parent=5 // pred_check
        _
      $region10: #{tpu_custom_call.1} parent=5 // pred_check_branch
        %141 = sbr.rel (%p138) target = $region12
      $region11: #{tpu_custom_call.1} parent=5 // pred_region
        %s142 = ssub.s32 %s22, 1
      $region12: #{tpu_custom_call.1} parent=5 // pred_fallthru
        _
      %p143 = scmp.lt.s32.totalorder %s22, 8
      // Predicated region
      $region13: #{tpu_custom_call.1} parent=5 // pred_check
        %p144 = pneg %p143
      $region14: #{tpu_custom_call.1} parent=5 // pred_check_branch
        %146 = sbr.rel (%p144) target = $region16
      $region15: #{tpu_custom_call.1} parent=5 // pred_region
        // Predicated region
        $region17: #{tpu_custom_call.1} parent=15 // pred_check
          %p147 = pneg %p54
        $region18: #{tpu_custom_call.1} parent=15 // pred_check_branch
          %149 = sbr.rel (%p147) target = $region20
        $region19: #{tpu_custom_call.1} parent=15 // pred_region
          %s150 = sand.u32 %s44, 1
          %s151 = scalar_lea.sflag [#allocation5], %s150
          %s152 = sand.u32 %s44, 1
          %s153 = smul.addr %s152, 16
          %s154 = scalar_lea.vmem [#allocation4], %s153
          %s155 = smul.u32 2, %s29
          %s157 = ssub.s32 256, 256
          %158 = vsyncadd %s151, %s157
          %s159 = smul.addr %s155, 128
          %s160 = scalar_lea.hbm %s1, %s159
          %s162 = sshll.u32 %s154, 4
          %s163 = int_to_ptr.vmem [resolvable:$true] %s162
          %165 = dma.hbm_to_vmem [thread:$0]  %s160, 256, %s163, %s151
        $region20: #{tpu_custom_call.1} parent=15 // pred_fallthru
          _
        // Predicated region
        $region21: #{tpu_custom_call.1} parent=15 // pred_check
          %p166 = pneg %p96
        $region22: #{tpu_custom_call.1} parent=15 // pred_check_branch
          %168 = sbr.rel (%p166) target = $region24
        $region23: #{tpu_custom_call.1} parent=15 // pred_region
          %s169 = sand.u32 %s86, 1
          %s170 = scalar_lea.sflag [#allocation8], %s169
          %s171 = sand.u32 %s86, 1
          %s172 = smul.addr %s171, 8
          %s173 = scalar_lea.vmem [#allocation7], %s172
          %s174 = smul.u32 %s29, 128
          %s175 = sld [smem:[#allocation3 + %s174]]
          %s176 = sadd.s32 %s174, 1
          %s177 = sld [smem:[#allocation3 + %s176]]
          %p178 = scmp.lt.s32.totalorder %s30, %s177
          %s179 = scalar_select %p178, %s30, %s177
          %p180 = scmp.gt.s32.totalorder %s175, %s179
          %s181 = scalar_select %p180, %s175, %s179
          %s183 = ssub.s32 128, 128
          %184 = vsyncadd %s170, %s183
          %s185 = smul.addr %s181, 64
          %s186 = scalar_lea.hbm %s2, %s185
          %s187 = sshll.u32 %s173, 4
          %s188 = int_to_ptr.vmem [resolvable:$true] %s187
          %193 = dma.hbm_to_vmem [thread:$0]  %s186, 128, %s188, %s170, 256, 64, 4
        $region24: #{tpu_custom_call.1} parent=15 // pred_fallthru
          _
      $region16: #{tpu_custom_call.1} parent=5 // pred_fallthru
        _
      %p194 = scmp.le.s32.totalorder 1, %s22
      %p195 = scmp.lt.s32.totalorder %s22, 9
      %p196 = pnand %p194, %p195
      %p197 = pneg %p196
      // Predicated region
      $region25: #{tpu_custom_call.1} parent=5 // pred_check
        _
      $region26: #{tpu_custom_call.1} parent=5 // pred_check_branch
        %199 = sbr.rel (%p196) target = $region28
      $region27: #{tpu_custom_call.1} parent=5 // pred_region
        %s200 = ssub.s32 %s22, 1
        %s201 = sand.u32 %s47, 1
        %s202 = scalar_lea.sflag [#allocation5], %s201
        %s203 = sand.u32 %s47, 1
        %s204 = smul.addr %s203, 16
        %s205 = scalar_lea.vmem [#allocation4], %s204
        // Predicated region
        $region29: #{tpu_custom_call.1} parent=27 // pred_check
          %p206 = pneg %p60
        $region30: #{tpu_custom_call.1} parent=27 // pred_check_branch
          %208 = sbr.rel (%p206) target = $region32
        $region31: #{tpu_custom_call.1} parent=27 // pred_region
          %209 = dma.done %s202, 256
        $region32: #{tpu_custom_call.1} parent=27 // pred_fallthru
          _
        %s210 = sand.u32 %s89, 1
        %s211 = scalar_lea.sflag [#allocation8], %s210
        %s212 = sand.u32 %s89, 1
        %s213 = smul.addr %s212, 8
        %s214 = scalar_lea.vmem [#allocation7], %s213
        // Predicated region
        $region33: #{tpu_custom_call.1} parent=27 // pred_check
          %p215 = pneg %p102
        $region34: #{tpu_custom_call.1} parent=27 // pred_check_branch
          %217 = sbr.rel (%p215) target = $region36
        $region35: #{tpu_custom_call.1} parent=27 // pred_region
          %218 = dma.done %s211, 128
        $region36: #{tpu_custom_call.1} parent=27 // pred_fallthru
          _
        %s219 = sand.u32 %s47, 1
        %s220 = scalar_lea.sflag [#allocation5], %s219
        %s221 = sand.u32 %s47, 1
        %s222 = smul.addr %s221, 16
        %s223 = scalar_lea.vmem [#allocation4], %s222
        %p224 = pneg %p60
        %p225 = pneg %p57
        %s226 = sand.u32 %s89, 1
        %s227 = scalar_lea.sflag [#allocation8], %s226
        %s228 = sand.u32 %s89, 1
        %s229 = smul.addr %s228, 8
        %s230 = scalar_lea.vmem [#allocation7], %s229
        %p231 = pneg %p102
        %p232 = pneg %p99
        %p233 = pneg %p128
        %p234 = pneg %p125
        %s235 = sand.u32 %s115, 1
        %s236 = scalar_lea.sflag [#allocation6], %s235
        %s237 = sand.u32 %s115, 1
        %s238 = smul.addr %s237, 32
        %s239 = scalar_lea.vmem [#allocation9], %s238
        %s240 = smul.u32 2, %s31
        %s241 = smul.u32 %s31, 128
        %s242 = sld [smem:[#allocation3 + %s241]]
        %s243 = sadd.s32 %s241, 1
        %s244 = sld [smem:[#allocation3 + %s243]]
        %p245 = scmp.lt.s32.totalorder %s32, %s244
        %s246 = scalar_select %p245, %s32, %s244
        %p247 = scmp.gt.s32.totalorder %s242, %s246
        %s248 = scalar_select %p247, %s242, %s246
        %s249 = smul.u32 2, %s31
        %p251 = scmp.eq.s32.totalorder %s32, 0
        // Predicated region
        $region37: #{tpu_custom_call.1} parent=27 // pred_check
          %p252 = pneg %p251
        $region38: #{tpu_custom_call.1} parent=27 // pred_check_branch
          %254 = sbr.rel (%p252) target = $region40
        $region39: #{tpu_custom_call.1} parent=27 // pred_region
          %255 = vst [vmem:[%s239] sm:$0xff] 0.0
          %256 = vst [vmem:[%s239 + $0x8] sm:$0xff] 0.0
          %257 = vst [vmem:[%s239 + $0x10] sm:$0xff] 0.0
          %258 = vst [vmem:[%s239 + $0x18] sm:$0xff] 0.0
        $region40: #{tpu_custom_call.1} parent=27 // pred_fallthru
          _
        %s259 = smul.u32 %s31, 128
        %s260 = sld [smem:[#allocation3 + %s259]]
        %s261 = sadd.s32 %s259, 1
        %s262 = sld [smem:[#allocation3 + %s261]]
        %p263 = scmp.ge.s32.totalorder %s32, %s260
        %p264 = scmp.le.s32.totalorder %s32, %s262
        %p265 = pnand %p263, %p264
        %p266 = pneg %p265
        // Predicated region
        $region41: #{tpu_custom_call.1} parent=27 // pred_check
          _
        $region42: #{tpu_custom_call.1} parent=27 // pred_check_branch
          %268 = sbr.rel (%p265) target = $region44
        $region43: #{tpu_custom_call.1} parent=27 // pred_region
          %v269 = vld [vmem:[%s205] sm:$0xff]
          %v270 = vld [vmem:[%s205 + $0x8] sm:$0xff]
          %s273 = smul.u32 %s32, 128
          %v274 = vstv %s273
          %v275 = vsub.s32 %v269, %v274
          %v276 = vsub.s32 %v270, %v274
          %v277 = vlaneseq
          %v278 = vshrl.u32 %v277, 7
          %v279 = vadd.s32 %v278, 8
          %v280 = vadd.s32 %v278, 16
          %v281 = vadd.s32 %v278, 24
          %v282 = vadd.s32 %v278, 32
          %v283 = vadd.s32 %v278, 40
          %v284 = vadd.s32 %v278, 48
          %v285 = vadd.s32 %v278, 56
          %v286 = vadd.s32 %v278, 64
          %v287 = vadd.s32 %v278, 72
          %v288 = vadd.s32 %v278, 80
          %v289 = vadd.s32 %v278, 88
          %v290 = vadd.s32 %v278, 96
          %v291 = vadd.s32 %v278, 104
          %v292 = vadd.s32 %v278, 112
          %v293 = vadd.s32 %v278, 120
          %v294 = vrot.slane %v269, 6
          %v295 = vrot.slane %v270, 6
          %v298 = vmul.f32 %v269, %v294
          %v299 = vmul.f32 %v270, %v295
          %v300 = vlaneseq
          %v301 = vshrl.u32 %v300, 7
          %v302 = vsub.s32 6, %v301
          %v303 = vrot.slane %v275, %v302
          %v304 = vlaneseq
          %v305 = vshrl.u32 %v304, 7
          %v306 = vsub.s32 6, %v305
          %v307 = vrot.slane %v276, %v306
          %vm308 = vcmp.eq.s32.totalorder %v278, %v303
          %vm309 = vcmp.eq.s32.totalorder %v278, %v307
          %vm310 = vcmp.eq.s32.totalorder %v279, %v303
          %vm311 = vcmp.eq.s32.totalorder %v279, %v307
          %vm312 = vcmp.eq.s32.totalorder %v280, %v303
          %vm313 = vcmp.eq.s32.totalorder %v280, %v307
          %vm314 = vcmp.eq.s32.totalorder %v281, %v303
          %vm315 = vcmp.eq.s32.totalorder %v281, %v307
          %vm316 = vcmp.eq.s32.totalorder %v282, %v303
          %vm317 = vcmp.eq.s32.totalorder %v282, %v307
          %vm318 = vcmp.eq.s32.totalorder %v283, %v303
          %vm319 = vcmp.eq.s32.totalorder %v283, %v307
          %vm320 = vcmp.eq.s32.totalorder %v284, %v303
          %vm321 = vcmp.eq.s32.totalorder %v284, %v307
          %vm322 = vcmp.eq.s32.totalorder %v285, %v303
          %vm323 = vcmp.eq.s32.totalorder %v285, %v307
          %vm324 = vcmp.eq.s32.totalorder %v286, %v303
          %vm325 = vcmp.eq.s32.totalorder %v286, %v307
          %vm326 = vcmp.eq.s32.totalorder %v287, %v303
          %vm327 = vcmp.eq.s32.totalorder %v287, %v307
          %vm328 = vcmp.eq.s32.totalorder %v288, %v303
          %vm329 = vcmp.eq.s32.totalorder %v288, %v307
          %vm330 = vcmp.eq.s32.totalorder %v289, %v303
          %vm331 = vcmp.eq.s32.totalorder %v289, %v307
          %vm332 = vcmp.eq.s32.totalorder %v290, %v303
          %vm333 = vcmp.eq.s32.totalorder %v290, %v307
          %vm334 = vcmp.eq.s32.totalorder %v291, %v303
          %vm335 = vcmp.eq.s32.totalorder %v291, %v307
          %vm336 = vcmp.eq.s32.totalorder %v292, %v303
          %vm337 = vcmp.eq.s32.totalorder %v292, %v307
          %vm338 = vcmp.eq.s32.totalorder %v293, %v303
          %vm339 = vcmp.eq.s32.totalorder %v293, %v307
          %v340 = vrot.slane %v269, 4
          %v341 = vrot.slane %v270, 4
          %v344 = vmul.f32 %v298, %v340
          %v345 = vmul.f32 %v299, %v341
          %v346 = vadd.s32 %v275, 1
          %v347 = vadd.s32 %v276, 1
          %v348 = vlaneseq
          %v349 = vshrl.u32 %v348, 7
          %v350 = vsub.s32 6, %v349
          %v351 = vrot.slane %v346, %v350
          %v352 = vlaneseq
          %v353 = vshrl.u32 %v352, 7
          %v354 = vsub.s32 6, %v353
          %v355 = vrot.slane %v347, %v354
          %vm356 = vcmp.eq.s32.totalorder %v278, %v351
          %vm357 = vcmp.eq.s32.totalorder %v278, %v355
          %vm358 = vcmp.eq.s32.totalorder %v279, %v351
          %vm359 = vcmp.eq.s32.totalorder %v279, %v355
          %vm360 = vcmp.eq.s32.totalorder %v280, %v351
          %vm361 = vcmp.eq.s32.totalorder %v280, %v355
          %vm362 = vcmp.eq.s32.totalorder %v281, %v351
          %vm363 = vcmp.eq.s32.totalorder %v281, %v355
          %vm364 = vcmp.eq.s32.totalorder %v282, %v351
          %vm365 = vcmp.eq.s32.totalorder %v282, %v355
          %vm366 = vcmp.eq.s32.totalorder %v283, %v351
          %vm367 = vcmp.eq.s32.totalorder %v283, %v355
          %vm368 = vcmp.eq.s32.totalorder %v284, %v351
          %vm369 = vcmp.eq.s32.totalorder %v284, %v355
          %vm370 = vcmp.eq.s32.totalorder %v285, %v351
          %vm371 = vcmp.eq.s32.totalorder %v285, %v355
          %vm372 = vcmp.eq.s32.totalorder %v286, %v351
          %vm373 = vcmp.eq.s32.totalorder %v286, %v355
          %vm374 = vcmp.eq.s32.totalorder %v287, %v351
          %vm375 = vcmp.eq.s32.totalorder %v287, %v355
          %vm376 = vcmp.eq.s32.totalorder %v288, %v351
          %vm377 = vcmp.eq.s32.totalorder %v288, %v355
          %vm378 = vcmp.eq.s32.totalorder %v289, %v351
          %vm379 = vcmp.eq.s32.totalorder %v289, %v355
          %vm380 = vcmp.eq.s32.totalorder %v290, %v351
          %vm381 = vcmp.eq.s32.totalorder %v290, %v355
          %vm382 = vcmp.eq.s32.totalorder %v291, %v351
          %vm383 = vcmp.eq.s32.totalorder %v291, %v355
          %vm384 = vcmp.eq.s32.totalorder %v292, %v351
          %vm385 = vcmp.eq.s32.totalorder %v292, %v355
          %vm386 = vcmp.eq.s32.totalorder %v293, %v351
          %vm387 = vcmp.eq.s32.totalorder %v293, %v355
          %v388 = vrot.slane %v269, 5
          %v389 = vrot.slane %v270, 5
          %v392 = vmul.f32 %v298, %v388
          %v393 = vmul.f32 %v299, %v389
          %v394 = vlaneseq
          %v395 = vshrl.u32 %v394, 7
          %v396 = vsub.s32 4, %v395
          %v397 = vrot.slane %v392, %v396
          %v398 = vlaneseq
          %v399 = vshrl.u32 %v398, 7
          %v400 = vsub.s32 4, %v399
          %v401 = vrot.slane %v393, %v400
          %v402 = vsel %vm356, %v397, 0.0
          %v403 = vsel %vm357, %v401, 0.0
          %v404 = vsel %vm358, %v397, 0.0
          %v405 = vsel %vm359, %v401, 0.0
          %v406 = vsel %vm360, %v397, 0.0
          %v407 = vsel %vm361, %v401, 0.0
          %v408 = vsel %vm362, %v397, 0.0
          %v409 = vsel %vm363, %v401, 0.0
          %v410 = vsel %vm364, %v397, 0.0
          %v411 = vsel %vm365, %v401, 0.0
          %v412 = vsel %vm366, %v397, 0.0
          %v413 = vsel %vm367, %v401, 0.0
          %v414 = vsel %vm368, %v397, 0.0
          %v415 = vsel %vm369, %v401, 0.0
          %v416 = vsel %vm370, %v397, 0.0
          %v417 = vsel %vm371, %v401, 0.0
          %v418 = vsel %vm372, %v397, 0.0
          %v419 = vsel %vm373, %v401, 0.0
          %v420 = vsel %vm374, %v397, 0.0
          %v421 = vsel %vm375, %v401, 0.0
          %v422 = vsel %vm376, %v397, 0.0
          %v423 = vsel %vm377, %v401, 0.0
          %v424 = vsel %vm378, %v397, 0.0
          %v425 = vsel %vm379, %v401, 0.0
          %v426 = vsel %vm380, %v397, 0.0
          %v427 = vsel %vm381, %v401, 0.0
          %v428 = vsel %vm382, %v397, 0.0
          %v429 = vsel %vm383, %v401, 0.0
          %v430 = vsel %vm384, %v397, 0.0
          %v431 = vsel %vm385, %v401, 0.0
          %v432 = vsel %vm386, %v397, 0.0
          %v433 = vsel %vm387, %v401, 0.0
          %v434 = vlaneseq
          %v435 = vshrl.u32 %v434, 7
          %v436 = vsub.s32 4, %v435
          %v437 = vrot.slane %v344, %v436
          %v438 = vlaneseq
          %v439 = vshrl.u32 %v438, 7
          %v440 = vsub.s32 4, %v439
          %v441 = vrot.slane %v345, %v440
          %v442 = vsel %vm308, %v437, %v402
          %v443 = vsel %vm309, %v441, %v403
          %v444 = vsel %vm310, %v437, %v404
          %v445 = vsel %vm311, %v441, %v405
          %v446 = vsel %vm312, %v437, %v406
          %v447 = vsel %vm313, %v441, %v407
          %v448 = vsel %vm314, %v437, %v408
          %v449 = vsel %vm315, %v441, %v409
          %v450 = vsel %vm316, %v437, %v410
          %v451 = vsel %vm317, %v441, %v411
          %v452 = vsel %vm318, %v437, %v412
          %v453 = vsel %vm319, %v441, %v413
          %v454 = vsel %vm320, %v437, %v414
          %v455 = vsel %vm321, %v441, %v415
          %v456 = vsel %vm322, %v437, %v416
          %v457 = vsel %vm323, %v441, %v417
          %v458 = vsel %vm324, %v437, %v418
          %v459 = vsel %vm325, %v441, %v419
          %v460 = vsel %vm326, %v437, %v420
          %v461 = vsel %vm327, %v441, %v421
          %v462 = vsel %vm328, %v437, %v422
          %v463 = vsel %vm329, %v441, %v423
          %v464 = vsel %vm330, %v437, %v424
          %v465 = vsel %vm331, %v441, %v425
          %v466 = vsel %vm332, %v437, %v426
          %v467 = vsel %vm333, %v441, %v427
          %v468 = vsel %vm334, %v437, %v428
          %v469 = vsel %vm335, %v441, %v429
          %v470 = vsel %vm336, %v437, %v430
          %v471 = vsel %vm337, %v441, %v431
          %v472 = vsel %vm338, %v437, %v432
          %v473 = vsel %vm339, %v441, %v433
          %v474 = vadd.f32 %v442, 0.0
          %v475 = vadd.f32 %v443, 0.0
          %v476 = vadd.f32 %v444, 0.0
          %v477 = vadd.f32 %v445, 0.0
          %v478 = vadd.f32 %v446, 0.0
          %v479 = vadd.f32 %v447, 0.0
          %v480 = vadd.f32 %v448, 0.0
          %v481 = vadd.f32 %v449, 0.0
          %v482 = vadd.f32 %v450, 0.0
          %v483 = vadd.f32 %v451, 0.0
          %v484 = vadd.f32 %v452, 0.0
          %v485 = vadd.f32 %v453, 0.0
          %v486 = vadd.f32 %v454, 0.0
          %v487 = vadd.f32 %v455, 0.0
          %v488 = vadd.f32 %v456, 0.0
          %v489 = vadd.f32 %v457, 0.0
          %v490 = vadd.f32 %v458, 0.0
          %v491 = vadd.f32 %v459, 0.0
          %v492 = vadd.f32 %v460, 0.0
          %v493 = vadd.f32 %v461, 0.0
          %v494 = vadd.f32 %v462, 0.0
          %v495 = vadd.f32 %v463, 0.0
          %v496 = vadd.f32 %v464, 0.0
          %v497 = vadd.f32 %v465, 0.0
          %v498 = vadd.f32 %v466, 0.0
          %v499 = vadd.f32 %v467, 0.0
          %v500 = vadd.f32 %v468, 0.0
          %v501 = vadd.f32 %v469, 0.0
          %v502 = vadd.f32 %v470, 0.0
          %v503 = vadd.f32 %v471, 0.0
          %v504 = vadd.f32 %v472, 0.0
          %v505 = vadd.f32 %v473, 0.0
          %v506 = vadd.s32 %v275, 8
          %v507 = vadd.s32 %v276, 8
          %v508 = vrot.slane %v269, 7
          %v509 = vrot.slane %v270, 7
          %v512 = vmul.f32 %v269, %v508
          %v513 = vmul.f32 %v270, %v509
          %v514 = vlaneseq
          %v515 = vshrl.u32 %v514, 7
          %v516 = vsub.s32 6, %v515
          %v517 = vrot.slane %v506, %v516
          %v518 = vlaneseq
          %v519 = vshrl.u32 %v518, 7
          %v520 = vsub.s32 6, %v519
          %v521 = vrot.slane %v507, %v520
          %vm522 = vcmp.eq.s32.totalorder %v278, %v517
          %vm523 = vcmp.eq.s32.totalorder %v278, %v521
          %vm524 = vcmp.eq.s32.totalorder %v279, %v517
          %vm525 = vcmp.eq.s32.totalorder %v279, %v521
          %vm526 = vcmp.eq.s32.totalorder %v280, %v517
          %vm527 = vcmp.eq.s32.totalorder %v280, %v521
          %vm528 = vcmp.eq.s32.totalorder %v281, %v517
          %vm529 = vcmp.eq.s32.totalorder %v281, %v521
          %vm530 = vcmp.eq.s32.totalorder %v282, %v517
          %vm531 = vcmp.eq.s32.totalorder %v282, %v521
          %vm532 = vcmp.eq.s32.totalorder %v283, %v517
          %vm533 = vcmp.eq.s32.totalorder %v283, %v521
          %vm534 = vcmp.eq.s32.totalorder %v284, %v517
          %vm535 = vcmp.eq.s32.totalorder %v284, %v521
          %vm536 = vcmp.eq.s32.totalorder %v285, %v517
          %vm537 = vcmp.eq.s32.totalorder %v285, %v521
          %vm538 = vcmp.eq.s32.totalorder %v286, %v517
          %vm539 = vcmp.eq.s32.totalorder %v286, %v521
          %vm540 = vcmp.eq.s32.totalorder %v287, %v517
          %vm541 = vcmp.eq.s32.totalorder %v287, %v521
          %vm542 = vcmp.eq.s32.totalorder %v288, %v517
          %vm543 = vcmp.eq.s32.totalorder %v288, %v521
          %vm544 = vcmp.eq.s32.totalorder %v289, %v517
          %vm545 = vcmp.eq.s32.totalorder %v289, %v521
          %vm546 = vcmp.eq.s32.totalorder %v290, %v517
          %vm547 = vcmp.eq.s32.totalorder %v290, %v521
          %vm548 = vcmp.eq.s32.totalorder %v291, %v517
          %vm549 = vcmp.eq.s32.totalorder %v291, %v521
          %vm550 = vcmp.eq.s32.totalorder %v292, %v517
          %vm551 = vcmp.eq.s32.totalorder %v292, %v521
          %vm552 = vcmp.eq.s32.totalorder %v293, %v517
          %vm553 = vcmp.eq.s32.totalorder %v293, %v521
          %v554 = vmul.f32 %v512, %v340
          %v555 = vmul.f32 %v513, %v341
          %v556 = vadd.s32 %v506, 1
          %v557 = vadd.s32 %v507, 1
          %v558 = vlaneseq
          %v559 = vshrl.u32 %v558, 7
          %v560 = vsub.s32 6, %v559
          %v561 = vrot.slane %v556, %v560
          %v562 = vlaneseq
          %v563 = vshrl.u32 %v562, 7
          %v564 = vsub.s32 6, %v563
          %v565 = vrot.slane %v557, %v564
          %vm566 = vcmp.eq.s32.totalorder %v278, %v561
          %vm567 = vcmp.eq.s32.totalorder %v278, %v565
          %vm568 = vcmp.eq.s32.totalorder %v279, %v561
          %vm569 = vcmp.eq.s32.totalorder %v279, %v565
          %vm570 = vcmp.eq.s32.totalorder %v280, %v561
          %vm571 = vcmp.eq.s32.totalorder %v280, %v565
          %vm572 = vcmp.eq.s32.totalorder %v281, %v561
          %vm573 = vcmp.eq.s32.totalorder %v281, %v565
          %vm574 = vcmp.eq.s32.totalorder %v282, %v561
          %vm575 = vcmp.eq.s32.totalorder %v282, %v565
          %vm576 = vcmp.eq.s32.totalorder %v283, %v561
          %vm577 = vcmp.eq.s32.totalorder %v283, %v565
          %vm578 = vcmp.eq.s32.totalorder %v284, %v561
          %vm579 = vcmp.eq.s32.totalorder %v284, %v565
          %vm580 = vcmp.eq.s32.totalorder %v285, %v561
          %vm581 = vcmp.eq.s32.totalorder %v285, %v565
          %vm582 = vcmp.eq.s32.totalorder %v286, %v561
          %vm583 = vcmp.eq.s32.totalorder %v286, %v565
          %vm584 = vcmp.eq.s32.totalorder %v287, %v561
          %vm585 = vcmp.eq.s32.totalorder %v287, %v565
          %vm586 = vcmp.eq.s32.totalorder %v288, %v561
          %vm587 = vcmp.eq.s32.totalorder %v288, %v565
          %vm588 = vcmp.eq.s32.totalorder %v289, %v561
          %vm589 = vcmp.eq.s32.totalorder %v289, %v565
          %vm590 = vcmp.eq.s32.totalorder %v290, %v561
          %vm591 = vcmp.eq.s32.totalorder %v290, %v565
          %vm592 = vcmp.eq.s32.totalorder %v291, %v561
          %vm593 = vcmp.eq.s32.totalorder %v291, %v565
          %vm594 = vcmp.eq.s32.totalorder %v292, %v561
          %vm595 = vcmp.eq.s32.totalorder %v292, %v565
          %vm596 = vcmp.eq.s32.totalorder %v293, %v561
          %vm597 = vcmp.eq.s32.totalorder %v293, %v565
          %v598 = vmul.f32 %v512, %v388
          %v599 = vmul.f32 %v513, %v389
          %v600 = vlaneseq
          %v601 = vshrl.u32 %v600, 7
          %v602 = vsub.s32 4, %v601
          %v603 = vrot.slane %v598, %v602
          %v604 = vlaneseq
          %v605 = vshrl.u32 %v604, 7
          %v606 = vsub.s32 4, %v605
          %v607 = vrot.slane %v599, %v606
          %v608 = vsel %vm566, %v603, 0.0
          %v609 = vsel %vm567, %v607, 0.0
          %v610 = vsel %vm568, %v603, 0.0
          %v611 = vsel %vm569, %v607, 0.0
          %v612 = vsel %vm570, %v603, 0.0
          %v613 = vsel %vm571, %v607, 0.0
          %v614 = vsel %vm572, %v603, 0.0
          %v615 = vsel %vm573, %v607, 0.0
          %v616 = vsel %vm574, %v603, 0.0
          %v617 = vsel %vm575, %v607, 0.0
          %v618 = vsel %vm576, %v603, 0.0
          %v619 = vsel %vm577, %v607, 0.0
          %v620 = vsel %vm578, %v603, 0.0
          %v621 = vsel %vm579, %v607, 0.0
          %v622 = vsel %vm580, %v603, 0.0
          %v623 = vsel %vm581, %v607, 0.0
          %v624 = vsel %vm582, %v603, 0.0
          %v625 = vsel %vm583, %v607, 0.0
          %v626 = vsel %vm584, %v603, 0.0
          %v627 = vsel %vm585, %v607, 0.0
          %v628 = vsel %vm586, %v603, 0.0
          %v629 = vsel %vm587, %v607, 0.0
          %v630 = vsel %vm588, %v603, 0.0
          %v631 = vsel %vm589, %v607, 0.0
          %v632 = vsel %vm590, %v603, 0.0
          %v633 = vsel %vm591, %v607, 0.0
          %v634 = vsel %vm592, %v603, 0.0
          %v635 = vsel %vm593, %v607, 0.0
          %v636 = vsel %vm594, %v603, 0.0
          %v637 = vsel %vm595, %v607, 0.0
          %v638 = vsel %vm596, %v603, 0.0
          %v639 = vsel %vm597, %v607, 0.0
          %v640 = vlaneseq
          %v641 = vshrl.u32 %v640, 7
          %v642 = vsub.s32 4, %v641
          %v643 = vrot.slane %v554, %v642
          %v644 = vlaneseq
          %v645 = vshrl.u32 %v644, 7
          %v646 = vsub.s32 4, %v645
          %v647 = vrot.slane %v555, %v646
          %v648 = vsel %vm522, %v643, %v608
          %v649 = vsel %vm523, %v647, %v609
          %v650 = vsel %vm524, %v643, %v610
          %v651 = vsel %vm525, %v647, %v611
          %v652 = vsel %vm526, %v643, %v612
          %v653 = vsel %vm527, %v647, %v613
          %v654 = vsel %vm528, %v643, %v614
          %v655 = vsel %vm529, %v647, %v615
          %v656 = vsel %vm530, %v643, %v616
          %v657 = vsel %vm531, %v647, %v617
          %v658 = vsel %vm532, %v643, %v618
          %v659 = vsel %vm533, %v647, %v619
          %v660 = vsel %vm534, %v643, %v620
          %v661 = vsel %vm535, %v647, %v621
          %v662 = vsel %vm536, %v643, %v622
          %v663 = vsel %vm537, %v647, %v623
          %v664 = vsel %vm538, %v643, %v624
          %v665 = vsel %vm539, %v647, %v625
          %v666 = vsel %vm540, %v643, %v626
          %v667 = vsel %vm541, %v647, %v627
          %v668 = vsel %vm542, %v643, %v628
          %v669 = vsel %vm543, %v647, %v629
          %v670 = vsel %vm544, %v643, %v630
          %v671 = vsel %vm545, %v647, %v631
          %v672 = vsel %vm546, %v643, %v632
          %v673 = vsel %vm547, %v647, %v633
          %v674 = vsel %vm548, %v643, %v634
          %v675 = vsel %vm549, %v647, %v635
          %v676 = vsel %vm550, %v643, %v636
          %v677 = vsel %vm551, %v647, %v637
          %v678 = vsel %vm552, %v643, %v638
          %v679 = vsel %vm553, %v647, %v639
          %v680 = vadd.f32 %v474, %v648
          %v681 = vadd.f32 %v475, %v649
          %v682 = vadd.f32 %v476, %v650
          %v683 = vadd.f32 %v477, %v651
          %v684 = vadd.f32 %v478, %v652
          %v685 = vadd.f32 %v479, %v653
          %v686 = vadd.f32 %v480, %v654
          %v687 = vadd.f32 %v481, %v655
          %v688 = vadd.f32 %v482, %v656
          %v689 = vadd.f32 %v483, %v657
          %v690 = vadd.f32 %v484, %v658
          %v691 = vadd.f32 %v485, %v659
          %v692 = vadd.f32 %v486, %v660
          %v693 = vadd.f32 %v487, %v661
          %v694 = vadd.f32 %v488, %v662
          %v695 = vadd.f32 %v489, %v663
          %v696 = vadd.f32 %v490, %v664
          %v697 = vadd.f32 %v491, %v665
          %v698 = vadd.f32 %v492, %v666
          %v699 = vadd.f32 %v493, %v667
          %v700 = vadd.f32 %v494, %v668
          %v701 = vadd.f32 %v495, %v669
          %v702 = vadd.f32 %v496, %v670
          %v703 = vadd.f32 %v497, %v671
          %v704 = vadd.f32 %v498, %v672
          %v705 = vadd.f32 %v499, %v673
          %v706 = vadd.f32 %v500, %v674
          %v707 = vadd.f32 %v501, %v675
          %v708 = vadd.f32 %v502, %v676
          %v709 = vadd.f32 %v503, %v677
          %v710 = vadd.f32 %v504, %v678
          %v711 = vadd.f32 %v505, %v679
          %v712 = vadd.s32 %v275, 64
          %v713 = vadd.s32 %v276, 64
          %v714 = vmul.f32 %v269, %v388
          %v715 = vmul.f32 %v270, %v389
          %v716 = vlaneseq
          %v717 = vshrl.u32 %v716, 7
          %v718 = vsub.s32 6, %v717
          %v719 = vrot.slane %v712, %v718
          %v720 = vlaneseq
          %v721 = vshrl.u32 %v720, 7
          %v722 = vsub.s32 6, %v721
          %v723 = vrot.slane %v713, %v722
          %vm724 = vcmp.eq.s32.totalorder %v278, %v719
          %vm725 = vcmp.eq.s32.totalorder %v278, %v723
          %vm726 = vcmp.eq.s32.totalorder %v279, %v719
          %vm727 = vcmp.eq.s32.totalorder %v279, %v723
          %vm728 = vcmp.eq.s32.totalorder %v280, %v719
          %vm729 = vcmp.eq.s32.totalorder %v280, %v723
          %vm730 = vcmp.eq.s32.totalorder %v281, %v719
          %vm731 = vcmp.eq.s32.totalorder %v281, %v723
          %vm732 = vcmp.eq.s32.totalorder %v282, %v719
          %vm733 = vcmp.eq.s32.totalorder %v282, %v723
          %vm734 = vcmp.eq.s32.totalorder %v283, %v719
          %vm735 = vcmp.eq.s32.totalorder %v283, %v723
          %vm736 = vcmp.eq.s32.totalorder %v284, %v719
          %vm737 = vcmp.eq.s32.totalorder %v284, %v723
          %vm738 = vcmp.eq.s32.totalorder %v285, %v719
          %vm739 = vcmp.eq.s32.totalorder %v285, %v723
          %vm740 = vcmp.eq.s32.totalorder %v286, %v719
          %vm741 = vcmp.eq.s32.totalorder %v286, %v723
          %vm742 = vcmp.eq.s32.totalorder %v287, %v719
          %vm743 = vcmp.eq.s32.totalorder %v287, %v723
          %vm744 = vcmp.eq.s32.totalorder %v288, %v719
          %vm745 = vcmp.eq.s32.totalorder %v288, %v723
          %vm746 = vcmp.eq.s32.totalorder %v289, %v719
          %vm747 = vcmp.eq.s32.totalorder %v289, %v723
          %vm748 = vcmp.eq.s32.totalorder %v290, %v719
          %vm749 = vcmp.eq.s32.totalorder %v290, %v723
          %vm750 = vcmp.eq.s32.totalorder %v291, %v719
          %vm751 = vcmp.eq.s32.totalorder %v291, %v723
          %vm752 = vcmp.eq.s32.totalorder %v292, %v719
          %vm753 = vcmp.eq.s32.totalorder %v292, %v723
          %vm754 = vcmp.eq.s32.totalorder %v293, %v719
          %vm755 = vcmp.eq.s32.totalorder %v293, %v723
          %v756 = vrot.slane %v269, 3
          %v757 = vrot.slane %v270, 3
          %v760 = vmul.f32 %v714, %v756
          %v761 = vmul.f32 %v715, %v757
          %v762 = vadd.s32 %v712, 1
          %v763 = vadd.s32 %v713, 1
          %v764 = vlaneseq
          %v765 = vshrl.u32 %v764, 7
          %v766 = vsub.s32 6, %v765
          %v767 = vrot.slane %v762, %v766
          %v768 = vlaneseq
          %v769 = vshrl.u32 %v768, 7
          %v770 = vsub.s32 6, %v769
          %v771 = vrot.slane %v763, %v770
          %vm772 = vcmp.eq.s32.totalorder %v278, %v767
          %vm773 = vcmp.eq.s32.totalorder %v278, %v771
          %vm774 = vcmp.eq.s32.totalorder %v279, %v767
          %vm775 = vcmp.eq.s32.totalorder %v279, %v771
          %vm776 = vcmp.eq.s32.totalorder %v280, %v767
          %vm777 = vcmp.eq.s32.totalorder %v280, %v771
          %vm778 = vcmp.eq.s32.totalorder %v281, %v767
          %vm779 = vcmp.eq.s32.totalorder %v281, %v771
          %vm780 = vcmp.eq.s32.totalorder %v282, %v767
          %vm781 = vcmp.eq.s32.totalorder %v282, %v771
          %vm782 = vcmp.eq.s32.totalorder %v283, %v767
          %vm783 = vcmp.eq.s32.totalorder %v283, %v771
          %vm784 = vcmp.eq.s32.totalorder %v284, %v767
          %vm785 = vcmp.eq.s32.totalorder %v284, %v771
          %vm786 = vcmp.eq.s32.totalorder %v285, %v767
          %vm787 = vcmp.eq.s32.totalorder %v285, %v771
          %vm788 = vcmp.eq.s32.totalorder %v286, %v767
          %vm789 = vcmp.eq.s32.totalorder %v286, %v771
          %vm790 = vcmp.eq.s32.totalorder %v287, %v767
          %vm791 = vcmp.eq.s32.totalorder %v287, %v771
          %vm792 = vcmp.eq.s32.totalorder %v288, %v767
          %vm793 = vcmp.eq.s32.totalorder %v288, %v771
          %vm794 = vcmp.eq.s32.totalorder %v289, %v767
          %vm795 = vcmp.eq.s32.totalorder %v289, %v771
          %vm796 = vcmp.eq.s32.totalorder %v290, %v767
          %vm797 = vcmp.eq.s32.totalorder %v290, %v771
          %vm798 = vcmp.eq.s32.totalorder %v291, %v767
          %vm799 = vcmp.eq.s32.totalorder %v291, %v771
          %vm800 = vcmp.eq.s32.totalorder %v292, %v767
          %vm801 = vcmp.eq.s32.totalorder %v292, %v771
          %vm802 = vcmp.eq.s32.totalorder %v293, %v767
          %vm803 = vcmp.eq.s32.totalorder %v293, %v771
          %v804 = vmul.f32 %v714, %v340
          %v805 = vmul.f32 %v715, %v341
          %v806 = vlaneseq
          %v807 = vshrl.u32 %v806, 7
          %v808 = vsub.s32 5, %v807
          %v809 = vrot.slane %v804, %v808
          %v810 = vlaneseq
          %v811 = vshrl.u32 %v810, 7
          %v812 = vsub.s32 5, %v811
          %v813 = vrot.slane %v805, %v812
          %v814 = vsel %vm772, %v809, 0.0
          %v815 = vsel %vm773, %v813, 0.0
          %v816 = vsel %vm774, %v809, 0.0
          %v817 = vsel %vm775, %v813, 0.0
          %v818 = vsel %vm776, %v809, 0.0
          %v819 = vsel %vm777, %v813, 0.0
          %v820 = vsel %vm778, %v809, 0.0
          %v821 = vsel %vm779, %v813, 0.0
          %v822 = vsel %vm780, %v809, 0.0
          %v823 = vsel %vm781, %v813, 0.0
          %v824 = vsel %vm782, %v809, 0.0
          %v825 = vsel %vm783, %v813, 0.0
          %v826 = vsel %vm784, %v809, 0.0
          %v827 = vsel %vm785, %v813, 0.0
          %v828 = vsel %vm786, %v809, 0.0
          %v829 = vsel %vm787, %v813, 0.0
          %v830 = vsel %vm788, %v809, 0.0
          %v831 = vsel %vm789, %v813, 0.0
          %v832 = vsel %vm790, %v809, 0.0
          %v833 = vsel %vm791, %v813, 0.0
          %v834 = vsel %vm792, %v809, 0.0
          %v835 = vsel %vm793, %v813, 0.0
          %v836 = vsel %vm794, %v809, 0.0
          %v837 = vsel %vm795, %v813, 0.0
          %v838 = vsel %vm796, %v809, 0.0
          %v839 = vsel %vm797, %v813, 0.0
          %v840 = vsel %vm798, %v809, 0.0
          %v841 = vsel %vm799, %v813, 0.0
          %v842 = vsel %vm800, %v809, 0.0
          %v843 = vsel %vm801, %v813, 0.0
          %v844 = vsel %vm802, %v809, 0.0
          %v845 = vsel %vm803, %v813, 0.0
          %v846 = vlaneseq
          %v847 = vshrl.u32 %v846, 7
          %v848 = vsub.s32 5, %v847
          %v849 = vrot.slane %v760, %v848
          %v850 = vlaneseq
          %v851 = vshrl.u32 %v850, 7
          %v852 = vsub.s32 5, %v851
          %v853 = vrot.slane %v761, %v852
          %v854 = vsel %vm724, %v849, %v814
          %v855 = vsel %vm725, %v853, %v815
          %v856 = vsel %vm726, %v849, %v816
          %v857 = vsel %vm727, %v853, %v817
          %v858 = vsel %vm728, %v849, %v818
          %v859 = vsel %vm729, %v853, %v819
          %v860 = vsel %vm730, %v849, %v820
          %v861 = vsel %vm731, %v853, %v821
          %v862 = vsel %vm732, %v849, %v822
          %v863 = vsel %vm733, %v853, %v823
          %v864 = vsel %vm734, %v849, %v824
          %v865 = vsel %vm735, %v853, %v825
          %v866 = vsel %vm736, %v849, %v826
          %v867 = vsel %vm737, %v853, %v827
          %v868 = vsel %vm738, %v849, %v828
          %v869 = vsel %vm739, %v853, %v829
          %v870 = vsel %vm740, %v849, %v830
          %v871 = vsel %vm741, %v853, %v831
          %v872 = vsel %vm742, %v849, %v832
          %v873 = vsel %vm743, %v853, %v833
          %v874 = vsel %vm744, %v849, %v834
          %v875 = vsel %vm745, %v853, %v835
          %v876 = vsel %vm746, %v849, %v836
          %v877 = vsel %vm747, %v853, %v837
          %v878 = vsel %vm748, %v849, %v838
          %v879 = vsel %vm749, %v853, %v839
          %v880 = vsel %vm750, %v849, %v840
          %v881 = vsel %vm751, %v853, %v841
          %v882 = vsel %vm752, %v849, %v842
          %v883 = vsel %vm753, %v853, %v843
          %v884 = vsel %vm754, %v849, %v844
          %v885 = vsel %vm755, %v853, %v845
          %v886 = vadd.f32 %v680, %v854
          %v887 = vadd.f32 %v681, %v855
          %v888 = vadd.f32 %v682, %v856
          %v889 = vadd.f32 %v683, %v857
          %v890 = vadd.f32 %v684, %v858
          %v891 = vadd.f32 %v685, %v859
          %v892 = vadd.f32 %v686, %v860
          %v893 = vadd.f32 %v687, %v861
          %v894 = vadd.f32 %v688, %v862
          %v895 = vadd.f32 %v689, %v863
          %v896 = vadd.f32 %v690, %v864
          %v897 = vadd.f32 %v691, %v865
          %v898 = vadd.f32 %v692, %v866
          %v899 = vadd.f32 %v693, %v867
          %v900 = vadd.f32 %v694, %v868
          %v901 = vadd.f32 %v695, %v869
          %v902 = vadd.f32 %v696, %v870
          %v903 = vadd.f32 %v697, %v871
          %v904 = vadd.f32 %v698, %v872
          %v905 = vadd.f32 %v699, %v873
          %v906 = vadd.f32 %v700, %v874
          %v907 = vadd.f32 %v701, %v875
          %v908 = vadd.f32 %v702, %v876
          %v909 = vadd.f32 %v703, %v877
          %v910 = vadd.f32 %v704, %v878
          %v911 = vadd.f32 %v705, %v879
          %v912 = vadd.f32 %v706, %v880
          %v913 = vadd.f32 %v707, %v881
          %v914 = vadd.f32 %v708, %v882
          %v915 = vadd.f32 %v709, %v883
          %v916 = vadd.f32 %v710, %v884
          %v917 = vadd.f32 %v711, %v885
          %v918 = vadd.s32 %v275, 72
          %v919 = vadd.s32 %v276, 72
          %v920 = vlaneseq
          %v921 = vshrl.u32 %v920, 7
          %v922 = vsub.s32 6, %v921
          %v923 = vrot.slane %v918, %v922
          %v924 = vlaneseq
          %v925 = vshrl.u32 %v924, 7
          %v926 = vsub.s32 6, %v925
          %v927 = vrot.slane %v919, %v926
          %vm928 = vcmp.eq.s32.totalorder %v278, %v923
          %vm929 = vcmp.eq.s32.totalorder %v278, %v927
          %vm930 = vcmp.eq.s32.totalorder %v279, %v923
          %vm931 = vcmp.eq.s32.totalorder %v279, %v927
          %vm932 = vcmp.eq.s32.totalorder %v280, %v923
          %vm933 = vcmp.eq.s32.totalorder %v280, %v927
          %vm934 = vcmp.eq.s32.totalorder %v281, %v923
          %vm935 = vcmp.eq.s32.totalorder %v281, %v927
          %vm936 = vcmp.eq.s32.totalorder %v282, %v923
          %vm937 = vcmp.eq.s32.totalorder %v282, %v927
          %vm938 = vcmp.eq.s32.totalorder %v283, %v923
          %vm939 = vcmp.eq.s32.totalorder %v283, %v927
          %vm940 = vcmp.eq.s32.totalorder %v284, %v923
          %vm941 = vcmp.eq.s32.totalorder %v284, %v927
          %vm942 = vcmp.eq.s32.totalorder %v285, %v923
          %vm943 = vcmp.eq.s32.totalorder %v285, %v927
          %vm944 = vcmp.eq.s32.totalorder %v286, %v923
          %vm945 = vcmp.eq.s32.totalorder %v286, %v927
          %vm946 = vcmp.eq.s32.totalorder %v287, %v923
          %vm947 = vcmp.eq.s32.totalorder %v287, %v927
          %vm948 = vcmp.eq.s32.totalorder %v288, %v923
          %vm949 = vcmp.eq.s32.totalorder %v288, %v927
          %vm950 = vcmp.eq.s32.totalorder %v289, %v923
          %vm951 = vcmp.eq.s32.totalorder %v289, %v927
          %vm952 = vcmp.eq.s32.totalorder %v290, %v923
          %vm953 = vcmp.eq.s32.totalorder %v290, %v927
          %vm954 = vcmp.eq.s32.totalorder %v291, %v923
          %vm955 = vcmp.eq.s32.totalorder %v291, %v927
          %vm956 = vcmp.eq.s32.totalorder %v292, %v923
          %vm957 = vcmp.eq.s32.totalorder %v292, %v927
          %vm958 = vcmp.eq.s32.totalorder %v293, %v923
          %vm959 = vcmp.eq.s32.totalorder %v293, %v927
          %v960 = vmul.f32 %v298, %v756
          %v961 = vmul.f32 %v299, %v757
          %v962 = vadd.s32 %v918, 1
          %v963 = vadd.s32 %v919, 1
          %v964 = vlaneseq
          %v965 = vshrl.u32 %v964, 7
          %v966 = vsub.s32 6, %v965
          %v967 = vrot.slane %v962, %v966
          %v968 = vlaneseq
          %v969 = vshrl.u32 %v968, 7
          %v970 = vsub.s32 6, %v969
          %v971 = vrot.slane %v963, %v970
          %vm972 = vcmp.eq.s32.totalorder %v278, %v967
          %vm973 = vcmp.eq.s32.totalorder %v278, %v971
          %vm974 = vcmp.eq.s32.totalorder %v279, %v967
          %vm975 = vcmp.eq.s32.totalorder %v279, %v971
          %vm976 = vcmp.eq.s32.totalorder %v280, %v967
          %vm977 = vcmp.eq.s32.totalorder %v280, %v971
          %vm978 = vcmp.eq.s32.totalorder %v281, %v967
          %vm979 = vcmp.eq.s32.totalorder %v281, %v971
          %vm980 = vcmp.eq.s32.totalorder %v282, %v967
          %vm981 = vcmp.eq.s32.totalorder %v282, %v971
          %vm982 = vcmp.eq.s32.totalorder %v283, %v967
          %vm983 = vcmp.eq.s32.totalorder %v283, %v971
          %vm984 = vcmp.eq.s32.totalorder %v284, %v967
          %vm985 = vcmp.eq.s32.totalorder %v284, %v971
          %vm986 = vcmp.eq.s32.totalorder %v285, %v967
          %vm987 = vcmp.eq.s32.totalorder %v285, %v971
          %vm988 = vcmp.eq.s32.totalorder %v286, %v967
          %vm989 = vcmp.eq.s32.totalorder %v286, %v971
          %vm990 = vcmp.eq.s32.totalorder %v287, %v967
          %vm991 = vcmp.eq.s32.totalorder %v287, %v971
          %vm992 = vcmp.eq.s32.totalorder %v288, %v967
          %vm993 = vcmp.eq.s32.totalorder %v288, %v971
          %vm994 = vcmp.eq.s32.totalorder %v289, %v967
          %vm995 = vcmp.eq.s32.totalorder %v289, %v971
          %vm996 = vcmp.eq.s32.totalorder %v290, %v967
          %vm997 = vcmp.eq.s32.totalorder %v290, %v971
          %vm998 = vcmp.eq.s32.totalorder %v291, %v967
          %vm999 = vcmp.eq.s32.totalorder %v291, %v971
          %vm1000 = vcmp.eq.s32.totalorder %v292, %v967
          %vm1001 = vcmp.eq.s32.totalorder %v292, %v971
          %vm1002 = vcmp.eq.s32.totalorder %v293, %v967
          %vm1003 = vcmp.eq.s32.totalorder %v293, %v971
          %v1004 = vlaneseq
          %v1005 = vshrl.u32 %v1004, 7
          %v1006 = vsub.s32 5, %v1005
          %v1007 = vrot.slane %v344, %v1006
          %v1008 = vlaneseq
          %v1009 = vshrl.u32 %v1008, 7
          %v1010 = vsub.s32 5, %v1009
          %v1011 = vrot.slane %v345, %v1010
          %v1012 = vsel %vm972, %v1007, 0.0
          %v1013 = vsel %vm973, %v1011, 0.0
          %v1014 = vsel %vm974, %v1007, 0.0
          %v1015 = vsel %vm975, %v1011, 0.0
          %v1016 = vsel %vm976, %v1007, 0.0
          %v1017 = vsel %vm977, %v1011, 0.0
          %v1018 = vsel %vm978, %v1007, 0.0
          %v1019 = vsel %vm979, %v1011, 0.0
          %v1020 = vsel %vm980, %v1007, 0.0
          %v1021 = vsel %vm981, %v1011, 0.0
          %v1022 = vsel %vm982, %v1007, 0.0
          %v1023 = vsel %vm983, %v1011, 0.0
          %v1024 = vsel %vm984, %v1007, 0.0
          %v1025 = vsel %vm985, %v1011, 0.0
          %v1026 = vsel %vm986, %v1007, 0.0
          %v1027 = vsel %vm987, %v1011, 0.0
          %v1028 = vsel %vm988, %v1007, 0.0
          %v1029 = vsel %vm989, %v1011, 0.0
          %v1030 = vsel %vm990, %v1007, 0.0
          %v1031 = vsel %vm991, %v1011, 0.0
          %v1032 = vsel %vm992, %v1007, 0.0
          %v1033 = vsel %vm993, %v1011, 0.0
          %v1034 = vsel %vm994, %v1007, 0.0
          %v1035 = vsel %vm995, %v1011, 0.0
          %v1036 = vsel %vm996, %v1007, 0.0
          %v1037 = vsel %vm997, %v1011, 0.0
          %v1038 = vsel %vm998, %v1007, 0.0
          %v1039 = vsel %vm999, %v1011, 0.0
          %v1040 = vsel %vm1000, %v1007, 0.0
          %v1041 = vsel %vm1001, %v1011, 0.0
          %v1042 = vsel %vm1002, %v1007, 0.0
          %v1043 = vsel %vm1003, %v1011, 0.0
          %v1044 = vlaneseq
          %v1045 = vshrl.u32 %v1044, 7
          %v1046 = vsub.s32 5, %v1045
          %v1047 = vrot.slane %v960, %v1046
          %v1048 = vlaneseq
          %v1049 = vshrl.u32 %v1048, 7
          %v1050 = vsub.s32 5, %v1049
          %v1051 = vrot.slane %v961, %v1050
          %v1052 = vsel %vm928, %v1047, %v1012
          %v1053 = vsel %vm929, %v1051, %v1013
          %v1054 = vsel %vm930, %v1047, %v1014
          %v1055 = vsel %vm931, %v1051, %v1015
          %v1056 = vsel %vm932, %v1047, %v1016
          %v1057 = vsel %vm933, %v1051, %v1017
          %v1058 = vsel %vm934, %v1047, %v1018
          %v1059 = vsel %vm935, %v1051, %v1019
          %v1060 = vsel %vm936, %v1047, %v1020
          %v1061 = vsel %vm937, %v1051, %v1021
          %v1062 = vsel %vm938, %v1047, %v1022
          %v1063 = vsel %vm939, %v1051, %v1023
          %v1064 = vsel %vm940, %v1047, %v1024
          %v1065 = vsel %vm941, %v1051, %v1025
          %v1066 = vsel %vm942, %v1047, %v1026
          %v1067 = vsel %vm943, %v1051, %v1027
          %v1068 = vsel %vm944, %v1047, %v1028
          %v1069 = vsel %vm945, %v1051, %v1029
          %v1070 = vsel %vm946, %v1047, %v1030
          %v1071 = vsel %vm947, %v1051, %v1031
          %v1072 = vsel %vm948, %v1047, %v1032
          %v1073 = vsel %vm949, %v1051, %v1033
          %v1074 = vsel %vm950, %v1047, %v1034
          %v1075 = vsel %vm951, %v1051, %v1035
          %v1076 = vsel %vm952, %v1047, %v1036
          %v1077 = vsel %vm953, %v1051, %v1037
          %v1078 = vsel %vm954, %v1047, %v1038
          %v1079 = vsel %vm955, %v1051, %v1039
          %v1080 = vsel %vm956, %v1047, %v1040
          %v1081 = vsel %vm957, %v1051, %v1041
          %v1082 = vsel %vm958, %v1047, %v1042
          %v1083 = vsel %vm959, %v1051, %v1043
          %v1084 = vadd.f32 %v886, %v1052
          %v1085 = vadd.f32 %v887, %v1053
          %v1086 = vadd.f32 %v888, %v1054
          %v1087 = vadd.f32 %v889, %v1055
          %v1088 = vadd.f32 %v890, %v1056
          %v1089 = vadd.f32 %v891, %v1057
          %v1090 = vadd.f32 %v892, %v1058
          %v1091 = vadd.f32 %v893, %v1059
          %v1092 = vadd.f32 %v894, %v1060
          %v1093 = vadd.f32 %v895, %v1061
          %v1094 = vadd.f32 %v896, %v1062
          %v1095 = vadd.f32 %v897, %v1063
          %v1096 = vadd.f32 %v898, %v1064
          %v1097 = vadd.f32 %v899, %v1065
          %v1098 = vadd.f32 %v900, %v1066
          %v1099 = vadd.f32 %v901, %v1067
          %v1100 = vadd.f32 %v902, %v1068
          %v1101 = vadd.f32 %v903, %v1069
          %v1102 = vadd.f32 %v904, %v1070
          %v1103 = vadd.f32 %v905, %v1071
          %v1104 = vadd.f32 %v906, %v1072
          %v1105 = vadd.f32 %v907, %v1073
          %v1106 = vadd.f32 %v908, %v1074
          %v1107 = vadd.f32 %v909, %v1075
          %v1108 = vadd.f32 %v910, %v1076
          %v1109 = vadd.f32 %v911, %v1077
          %v1110 = vadd.f32 %v912, %v1078
          %v1111 = vadd.f32 %v913, %v1079
          %v1112 = vadd.f32 %v914, %v1080
          %v1113 = vadd.f32 %v915, %v1081
          %v1114 = vadd.f32 %v916, %v1082
          %v1115 = vadd.f32 %v917, %v1083
          %v1116 = vld [vmem:[%s239] sm:$0xff]
          %v1117 = vld [vmem:[%s239 + $0x8] sm:$0xff]
          %v1118 = vld [vmem:[%s239 + $0x10] sm:$0xff]
          %v1119 = vld [vmem:[%s239 + $0x18] sm:$0xff]
          %v1120 = vld [vmem:[%s214] sm:$0xf]
          %v1121 = vld [vmem:[%s214 + $0x4] sm:$0xf]
          %v1122 = vpack.c.bf16 %v1086, %v1084
          %v1123 = vpack.c.bf16 %v1087, %v1085
          %v1124 = vpack.c.bf16 %v1090, %v1088
          %v1125 = vpack.c.bf16 %v1091, %v1089
          %v1126 = vpack.c.bf16 %v1094, %v1092
          %v1127 = vpack.c.bf16 %v1095, %v1093
          %v1128 = vpack.c.bf16 %v1098, %v1096
          %v1129 = vpack.c.bf16 %v1099, %v1097
          %v1130 = vpack.c.bf16 %v1102, %v1100
          %v1131 = vpack.c.bf16 %v1103, %v1101
          %v1132 = vpack.c.bf16 %v1106, %v1104
          %v1133 = vpack.c.bf16 %v1107, %v1105
          %v1134 = vpack.c.bf16 %v1110, %v1108
          %v1135 = vpack.c.bf16 %v1111, %v1109
          %v1136 = vpack.c.bf16 %v1114, %v1112
          %v1137 = vpack.c.bf16 %v1115, %v1113
          %v1140 = vunpack.c.l.b16 %v1120
          %v1141 = vunpack.c.l.b16 %v1121
          %v1142 = vpack.c.b16 %v1141, %v1140
          %1144 = vmatprep.subr.bf16.mxu0 %v1123
          %1145 = vmatpush1.bf16.msra.mxu0 %v1122
          %1146 = vmatprep.subr.bf16.mxu0 %v1125
          %1147 = vmatpush1.bf16.msra.mxu0 %v1124
          %1148 = vmatprep.subr.bf16.mxu0 %v1127
          %1149 = vmatpush1.bf16.msra.mxu0 %v1126
          %1150 = vmatprep.subr.bf16.mxu0 %v1129
          %1151 = vmatpush1.bf16.msra.mxu0 %v1128
          %1152 = vmatprep.subr.bf16.mxu0 %v1131
          %1153 = vmatpush1.bf16.msra.mxu0 %v1130
          %1154 = vmatprep.subr.bf16.mxu0 %v1133
          %1155 = vmatpush1.bf16.msra.mxu0 %v1132
          %1156 = vmatprep.subr.bf16.mxu0 %v1135
          %1157 = vmatpush1.bf16.msra.mxu0 %v1134
          %1158 = vmatprep.subr.bf16.mxu0 %v1137
          %1159 = vmatpush1.bf16.msra.mxu0 %v1136
          %1160 = vmatprep.subr.bf16.mxu0 0
          %1161 = vmatpush1.bf16.msra.mxu0 0
          %1162 = vmatprep.subr.bf16.mxu0 0
          %1163 = vmatpush1.bf16.msra.mxu0 0
          %1164 = vmatprep.subr.bf16.mxu0 0
          %1165 = vmatpush1.bf16.msra.mxu0 0
          %1166 = vmatprep.subr.bf16.mxu0 0
          %1167 = vmatpush1.bf16.msra.mxu0 0
          %1168 = vmatprep.subr.bf16.mxu0 0
          %1169 = vmatpush1.bf16.msra.mxu0 0
          %1170 = vmatprep.subr.bf16.mxu0 0
          %1171 = vmatpush1.bf16.msra.mxu0 0
          %1172 = vmatprep.subr.bf16.mxu0 0
          %1173 = vmatpush1.bf16.msra.mxu0 0
          %1174 = vmatprep.subr.bf16.mxu0 0
          %1175 = vmatpush1.bf16.msra.mxu0 0
          %1176 = vmatprep.mubr.bf16.mxu0 0
          %1177 = vmatmul.mubr.bf16.gmra.mrb[0].mxu0 %v1142
          %v1178 = vpop.f32.mrb[0].mxu0
          %v1179 = vadd.f32 0.0, %v1178
          %v1180 = vpop.f32.mrb[0].mxu0
          %v1181 = vadd.f32 0.0, %v1180
          %v1182 = vpop.f32.mrb[0].mxu0
          %v1183 = vadd.f32 0.0, %v1182
          %v1184 = vpop.f32.mrb[0].mxu0
          %v1185 = vadd.f32 0.0, %v1184
          %1186 = vdwg.mxu0
          %v1187 = vadd.f32 %v1116, %v1179
          %v1188 = vadd.f32 %v1117, %v1181
          %v1189 = vadd.f32 %v1118, %v1183
          %v1190 = vadd.f32 %v1119, %v1185
          %1191 = vst [vmem:[%s239] sm:$0xff] %v1187
          %1192 = vst [vmem:[%s239 + $0x8] sm:$0xff] %v1188
          %1193 = vst [vmem:[%s239 + $0x10] sm:$0xff] %v1189
          %1194 = vst [vmem:[%s239 + $0x18] sm:$0xff] %v1190
        $region44: #{tpu_custom_call.1} parent=27 // pred_fallthru
          _
        %s1195 = sand.u32 %s115, 1
        %s1196 = scalar_lea.sflag [#allocation6], %s1195
        %s1197 = sand.u32 %s115, 1
        %s1198 = smul.addr %s1197, 32
        %s1199 = scalar_lea.vmem [#allocation9], %s1198
        // Predicated region
        $region45: #{tpu_custom_call.1} parent=27 // pred_check
          %p1200 = pneg %p125
        $region46: #{tpu_custom_call.1} parent=27 // pred_check_branch
          %1202 = sbr.rel (%p1200) target = $region48
        $region47: #{tpu_custom_call.1} parent=27 // pred_region
          %s1203 = smul.u32 2, %s31
          %s1205 = ssub.s32 512, 512
          %1206 = vsyncadd %s1196, %s1205
          %s1207 = smul.addr %s1203, 128
          %s1208 = scalar_lea.hbm %s3, %s1207
          %s1209 = sshll.u32 %s1199, 4
          %s1210 = int_to_ptr.vmem [resolvable:$true] %s1209
          %1215 = dma.vmem_to_hbm [thread:$0]  %s1210, 512, %s1208, %s1196, 256, 512, 16
        $region48: #{tpu_custom_call.1} parent=27 // pred_fallthru
          _
      $region28: #{tpu_custom_call.1} parent=5 // pred_fallthru
        _
      %p1216 = scmp.le.s32.totalorder 2, %s22
      // Predicated region
      $region49: #{tpu_custom_call.1} parent=5 // pred_check
        %p1217 = pneg %p1216
      $region50: #{tpu_custom_call.1} parent=5 // pred_check_branch
        %1219 = sbr.rel (%p1217) target = $region52
      $region51: #{tpu_custom_call.1} parent=5 // pred_region
        %s1220 = ssub.s32 %s22, 2
        // Predicated region
        $region53: #{tpu_custom_call.1} parent=51 // pred_check
          %p1221 = pneg %p131
        $region54: #{tpu_custom_call.1} parent=51 // pred_check_branch
          %1223 = sbr.rel (%p1221) target = $region56
        $region55: #{tpu_custom_call.1} parent=51 // pred_region
          %s1224 = sand.u32 %s116, 1
          %s1225 = scalar_lea.sflag [#allocation6], %s1224
          %s1226 = sand.u32 %s116, 1
          %s1227 = smul.addr %s1226, 32
          %s1228 = scalar_lea.vmem [#allocation9], %s1227
          %1229 = dma.done %s1225, 512
        $region56: #{tpu_custom_call.1} parent=51 // pred_fallthru
          _
      $region52: #{tpu_custom_call.1} parent=5 // pred_fallthru
        _
    $region6: #{tpu_custom_call.1} parent=1 // loop_footer
      %s26 = sadd.s32 1, %s22
    $region7: #{tpu_custom_call.1} parent=1 // loop_footer_branch
      %21 = sbr.rel target = $region3
    $region8: #{tpu_custom_call.1} parent=1 // loop_exit
      _
    %1230 = vsyncpa [#allocation5], 1
    %s1231 = scalar_lea.sflag [#allocation5], 1
    %1232 = vsyncpa %s1231, 1
    %1233 = vsyncpa [#allocation8], 1
    %s1234 = scalar_lea.sflag [#allocation8], 1
    %1235 = vsyncpa %s1234, 1
    %1236 = vsyncpa [#allocation6], 1
    %s1237 = scalar_lea.sflag [#allocation6], 1
    %1238 = vsyncpa %s1237, 1

</llo_original>
